<compile_context>
chip_gen: v6e
topology: v6e:2x2x1
jax: 0.10.0
libtpu: 0.0.40
codegen_flags: <defaults>
</compile_context>

<pallas_src>
import functools

import jax
import jax.numpy as jnp
import numpy as np
from jax.experimental import pallas as pl
from jax.experimental.pallas import tpu as pltpu


def conv_module_kernel(x_ref, wb1_ref, g1_ref, be1_ref,
                       wb2_ref, g2_ref, be2_ref,
                       gsum_ref, gbc_ref,
                       o_ref, pad1_ref, pad2_ref, *, W, Cout):
    """Fused ConvModule: 2x [vpad -> banded (dw3x3 . pw1x1) -> IN -> BN -> ReLU].

    x_ref:    (N, H, W*Cin)        lane-dense input
    wb*_ref:  (3, W*Cin_b, W*Cout) banded folded conv weights (per dy row-tap)
    g*/be*:   (1, Cout)            BatchNorm gamma / beta
    gsum_ref: (W*Cout, Cout)       0/1 selector: lane-dense col -> channel
    gbc_ref:  (Cout, W*Cout)       its transpose (channel -> lane-dense col)
    o_ref:    (N, H, W*Cout)       lane-dense output
    pad*_ref: (N, H+2, W*C)        VMEM scratch, vertical halo rows only
    """
    N, H, _ = x_ref.shape
    eps = 1e-5
    inv_hw = 1.0 / (H * W)
    wc_out = W * Cout

    def block(pad_ref, x_val, wb_ref, g_ref, be_ref):
        n_, hp2, wc_in = pad_ref.shape

        # Vertical zero padding only; horizontal halo is folded into the
        # banded weight. Zero just the two halo rows; interior is overwritten.
        zrow = jnp.zeros((n_, 1, wc_in), jnp.float32)
        pad_ref[:, 0:1, :] = zrow
        pad_ref[:, hp2 - 1:hp2, :] = zrow
        pad_ref[:, 1:H + 1, :] = x_val

        # Banded conv: 3 accumulated MXU matmuls, output already lane-dense.
        # Conv bias omitted: a per-channel constant is exactly cancelled by
        # the non-affine InstanceNorm that follows.
        y = jnp.dot(pad_ref[:, 0:H, :].reshape(N * H, wc_in), wb_ref[0],
                    preferred_element_type=jnp.float32)
        y = y + jnp.dot(pad_ref[:, 1:H + 1, :].reshape(N * H, wc_in), wb_ref[1],
                        preferred_element_type=jnp.float32)
        y = y + jnp.dot(pad_ref[:, 2:H + 2, :].reshape(N * H, wc_in), wb_ref[2],
                        preferred_element_type=jnp.float32)
        y3 = y.reshape(N, H, wc_out)                    # (N, H, W*Cout)

        # InstanceNorm stats per (n, c): sublane reduce over h (lane-dense),
        # then w-group reduce via a tiny selector matmul (no lane relayouts).
        s_w = jnp.sum(y3, axis=1)                       # (N, W*Cout)
        ss_w = jnp.sum(y3 * y3, axis=1)                 # (N, W*Cout)
        s = jnp.dot(s_w, gsum_ref[...], preferred_element_type=jnp.float32)
        ss = jnp.dot(ss_w, gsum_ref[...], preferred_element_type=jnp.float32)
        imean = s * inv_hw                              # (N, Cout)
        # TODO(synk): single-pass E[y^2]-E[y]^2 is fine at these magnitudes;
        #             use a two-pass centered variance when scaling up.
        ivar = ss * inv_hw - imean * imean              # biased (PyTorch)
        inv_in = jax.lax.rsqrt(ivar + eps)

        # BatchNorm (train-mode stats) after non-affine IN: batch mean == 0,
        # batch var = mean_n( ivar / (ivar + eps) ).
        bvar = jnp.mean(ivar * inv_in * inv_in, axis=0, keepdims=True)
        bn_scale = jax.lax.rsqrt(bvar + eps) * g_ref[...]       # (1, Cout)
        scale = inv_in * bn_scale                               # (N, Cout)
        shift = be_ref[...] - imean * scale                     # (N, Cout)

        # Broadcast per-(n,c) scale/shift back to the lane-dense layout with
        # the transposed selector, then one FMA + ReLU on full vregs.
        scale_ld = jnp.dot(scale, gbc_ref[...],
                           preferred_element_type=jnp.float32)  # (N, W*Cout)
        shift_ld = jnp.dot(shift, gbc_ref[...],
                           preferred_element_type=jnp.float32)
        return jnp.maximum(y3 * scale_ld[:, None, :] + shift_ld[:, None, :],
                           0.0)

    # block 1, then block 2; the intermediate never leaves VMEM.
    y1 = block(pad1_ref, x_ref[...], wb1_ref, g1_ref, be1_ref)
    o_ref[...] = block(pad2_ref, y1, wb2_ref, g2_ref, be2_ref)


def fold_block_params_banded(params, W):
    """Fold dw3x3 + pw1x1 into banded weights Wb[dy]: (W*Cin, W*Cout).

    Wb[dy, x*Cin + c, w*Cout + co] = dw[dy, x-w+1, c] * pw[c, co] for
    0 <= x-w+1 < 3, else 0; out-of-range taps realize the horizontal zero
    padding. The conv bias (pw_b + dw_b @ pw_w) is a per-channel constant and
    is exactly cancelled by the non-affine InstanceNorm, so it is dropped.
    """
    dw_w, dw_b, pw_w, pw_b, gamma, beta = params
    del dw_b, pw_b
    cin, cout = pw_w.shape
    wf = dw_w[:, :, :, None] * pw_w[None, None, :, :]          # (3,3,cin,cout)
    sel = np.asarray(
        np.arange(W)[:, None, None] ==
        np.arange(W)[None, :, None] + np.arange(3)[None, None, :] - 1,
        np.float32)                                            # (W, W, 3)
    wb = jnp.einsum('xwd,ydco->yxcwo', jnp.asarray(sel), wf)
    wb = wb.reshape(3, W * cin, W * cout)
    return wb, gamma, beta


def conv_module_pallas(x_ld, wb1, g1, be1, wb2, g2, be2, gsum, gbc,
                       N, H, W, Cin, Cout):
    kernel = functools.partial(conv_module_kernel, W=W, Cout=Cout)
    return pl.pallas_call(
        kernel,
        out_shape=jax.ShapeDtypeStruct((N, H, W * Cout), jnp.float32),
        in_specs=[pl.BlockSpec(memory_space=pltpu.MemorySpace.VMEM)] * 9,
        out_specs=pl.BlockSpec(memory_space=pltpu.MemorySpace.VMEM),
        scratch_shapes=[
            pltpu.VMEM((N, H + 2, W * Cin), jnp.float32),
            pltpu.VMEM((N, H + 2, W * Cout), jnp.float32),
        ],
    )(x_ld, wb1, g1, be1, wb2, g2, be2, gsum, gbc)


def init_block_params(key, c_in, c_out):
    """Deterministic synthetic parameters (shapes match the PyTorch layers)."""
    k1, k2, k3, k4 = jax.random.split(key, 4)
    # PyTorch depthwise weight (c_in, 1, 3, 3) -> stored as (3, 3, c_in)
    dw_w = 0.2 * jax.random.normal(k1, (3, 3, c_in), jnp.float32)
    dw_b = 0.1 * jax.random.normal(k2, (1, c_in), jnp.float32)
    # PyTorch pointwise weight (c_out, c_in, 1, 1) -> stored as (c_in, c_out)
    pw_w = 0.2 * jax.random.normal(k3, (c_in, c_out), jnp.float32)
    pw_b = 0.1 * jax.random.normal(k4, (1, c_out), jnp.float32)
    # BatchNorm2d default init: gamma=1, beta=0
    gamma = jnp.ones((1, c_out), jnp.float32)
    beta = jnp.zeros((1, c_out), jnp.float32)
    return (dw_w, dw_b, pw_w, pw_b, gamma, beta)


@jax.jit
def conv_module_forward(x_nchw, params1, params2):
    # External API: NCHW (PyTorch convention); lane-dense (N, H, W*C) inside.
    # TODO(synk): for real sizes accept/return NHWC to drop these HBM passes.
    N, Cin, H, W = x_nchw.shape
    Cout = params1[2].shape[1]
    x_ld = jnp.transpose(x_nchw, (0, 2, 3, 1)).reshape(N, H, W * Cin)
    wb1, g1, be1 = fold_block_params_banded(params1, W)
    wb2, g2, be2 = fold_block_params_banded(params2, W)
    # Constant 0/1 selector: lane-dense column w*Cout+co <-> channel co.
    gsum_np = np.kron(np.ones((W, 1), np.float32),
                      np.eye(Cout, dtype=np.float32))          # (W*Cout, Cout)
    gsum = jnp.asarray(gsum_np)
    gbc = jnp.asarray(gsum_np.T)                               # (Cout, W*Cout)
    y_ld = conv_module_pallas(x_ld, wb1, g1, be1, wb2, g2, be2, gsum, gbc,
                              N, H, W, Cin, Cout)
    return jnp.transpose(y_ld.reshape(N, H, W, Cout), (0, 3, 1, 2))


@jax.jit
def _reference_forward(x_nchw, params1, params2):
    """Plain-JAX reference (mirrors the PyTorch module) for a sanity check."""
    def block(x, params):
        dw_w, dw_b, pw_w, pw_b, gamma, beta = params
        N, H, W, C = x.shape
        xp = jnp.pad(x, ((0, 0), (1, 1), (1, 1), (0, 0)))
        acc = jnp.zeros_like(x)
        for dy in range(3):
            for dx in range(3):
                acc = acc + xp[:, dy:dy + H, dx:dx + W, :] * dw_w[dy, dx, :]
        acc = acc + dw_b.reshape(1, 1, 1, C)
        y = jnp.einsum('nhwc,cd->nhwd', acc, pw_w) + pw_b.reshape(1, 1, 1, -1)
        m = jnp.mean(y, axis=(1, 2), keepdims=True)
        v = jnp.mean((y - m) ** 2, axis=(1, 2), keepdims=True)
        y = (y - m) * jax.lax.rsqrt(v + 1e-5)
        bm = jnp.mean(y, axis=(0, 1, 2), keepdims=True)
        bv = jnp.mean((y - bm) ** 2, axis=(0, 1, 2), keepdims=True)
        y = (y - bm) * jax.lax.rsqrt(bv + 1e-5)
        y = y * gamma.reshape(1, 1, 1, -1) + beta.reshape(1, 1, 1, -1)
        return jnp.maximum(y, 0.0)

    x = jnp.transpose(x_nchw, (0, 2, 3, 1))
    x = block(x, params1)
    x = block(x, params2)
    return jnp.transpose(x, (0, 3, 1, 2))


if __name__ == "__main__":
    input_dim, output_dim = 4, 8
    N, H, W = 2, 16, 16

    key = jax.random.PRNGKey(0)
    kx, kp1, kp2 = jax.random.split(key, 3)

    x = jax.random.normal(kx, (N, input_dim, H, W), jnp.float32)
    params1 = init_block_params(kp1, input_dim, output_dim)
    params2 = init_block_params(kp2, output_dim, output_dim)

    out = conv_module_forward(x, params1, params2)
    out = jax.block_until_ready(out)

    assert out.shape == (N, output_dim, H, W), out.shape
    assert bool(jnp.all(jnp.isfinite(out)))

    # Structural sanity check vs. plain-JAX reference (loose tolerance: the
    # two paths may use different default f32 matmul precisions on the MXU).
    ref = jax.block_until_ready(_reference_forward(x, params1, params2))
    assert bool(jnp.allclose(out, ref, rtol=5e-2, atol=5e-2)), \
        float(jnp.max(jnp.abs(out - ref)))

    print("KERNEL_OK")
</pallas_src>

<mosaic_0001>
module attributes {stable_mosaic.version = 11 : i64} {
  func.func @conv_module_kernel(%arg0: memref<2x16x64xf32, #tpu.memory_space<vmem>>, %arg1: memref<3x64x128xf32, #tpu.memory_space<vmem>>, %arg2: memref<1x8xf32, #tpu.memory_space<vmem>>, %arg3: memref<1x8xf32, #tpu.memory_space<vmem>>, %arg4: memref<3x128x128xf32, #tpu.memory_space<vmem>>, %arg5: memref<1x8xf32, #tpu.memory_space<vmem>>, %arg6: memref<1x8xf32, #tpu.memory_space<vmem>>, %arg7: memref<128x8xf32, #tpu.memory_space<vmem>>, %arg8: memref<8x128xf32, #tpu.memory_space<vmem>>, %arg9: memref<2x16x128xf32, #tpu.memory_space<vmem>>, %arg10: memref<2x18x64xf32, #tpu.memory_space<vmem>>, %arg11: memref<2x18x128xf32, #tpu.memory_space<vmem>>) attributes {dimension_semantics = [], scalar_prefetch = 0 : i64, scratch_operands = 2 : i64, tpu.core_type = #tpu.core_type<tc>} {
    %c0 = arith.constant 0 : index
    %c0_0 = arith.constant 0 : index
    %c0_1 = arith.constant 0 : index
    %0 = vector.load %arg0[%c0, %c0_0, %c0_1] : memref<2x16x64xf32, #tpu.memory_space<vmem>>, vector<2x16x64xf32>
    %cst = arith.constant 0.000000e+00 : f32
    %1 = vector.broadcast %cst : f32 to vector<2x1x64xf32>
    %c0_2 = arith.constant 0 : index
    %c0_3 = arith.constant 0 : index
    %c0_4 = arith.constant 0 : index
    %2 = vector.load %arg10[%c0_2, %c0_3, %c0_4] : memref<2x18x64xf32, #tpu.memory_space<vmem>>, vector<2x1x64xf32>
    tpu.vector_store %arg10[%c0_2, %c0_3, %c0_4], %1 {strides = array<i32>} : memref<2x18x64xf32, #tpu.memory_space<vmem>>, vector<2x1x64xf32>,
    %c0_5 = arith.constant 0 : index
    %c17 = arith.constant 17 : index
    %c0_6 = arith.constant 0 : index
    %3 = vector.load %arg10[%c0_5, %c17, %c0_6] : memref<2x18x64xf32, #tpu.memory_space<vmem>>, vector<2x1x64xf32>
    tpu.vector_store %arg10[%c0_5, %c17, %c0_6], %1 {strides = array<i32>} : memref<2x18x64xf32, #tpu.memory_space<vmem>>, vector<2x1x64xf32>,
    %c0_7 = arith.constant 0 : index
    %c1 = arith.constant 1 : index
    %c0_8 = arith.constant 0 : index
    %4 = vector.load %arg10[%c0_7, %c1, %c0_8] : memref<2x18x64xf32, #tpu.memory_space<vmem>>, vector<2x16x64xf32>
    tpu.vector_store %arg10[%c0_7, %c1, %c0_8], %0 {strides = array<i32>} : memref<2x18x64xf32, #tpu.memory_space<vmem>>, vector<2x16x64xf32>,
    %c0_9 = arith.constant 0 : index
    %c0_10 = arith.constant 0 : index
    %c0_11 = arith.constant 0 : index
    %5 = vector.load %arg10[%c0_9, %c0_10, %c0_11] : memref<2x18x64xf32, #tpu.memory_space<vmem>>, vector<2x16x64xf32>
    %6 = vector.shape_cast %5 : vector<2x16x64xf32> to vector<32x64xf32>
    %c0_12 = arith.constant 0 : index
    %c0_13 = arith.constant 0 : index
    %c0_14 = arith.constant 0 : index
    %7 = vector.load %arg1[%c0_12, %c0_13, %c0_14] : memref<3x64x128xf32, #tpu.memory_space<vmem>>, vector<1x64x128xf32>
    %8 = vector.shape_cast %7 : vector<1x64x128xf32> to vector<64x128xf32>
    %cst_15 = arith.constant dense<0.000000e+00> : vector<32x128xf32>
    %9 = tpu.matmul %6, %8, %cst_15 {dimension_numbers = #tpu.dot_dimension_numbers<[1], [0], [0], [1], [0, 0, 1, 1], [], []>} : vector<32x64xf32>, vector<64x128xf32>, vector<32x128xf32> -> vector<32x128xf32>
    %c0_16 = arith.constant 0 : index
    %c1_17 = arith.constant 1 : index
    %c0_18 = arith.constant 0 : index
    %10 = vector.load %arg10[%c0_16, %c1_17, %c0_18] : memref<2x18x64xf32, #tpu.memory_space<vmem>>, vector<2x16x64xf32>
    %11 = vector.shape_cast %10 : vector<2x16x64xf32> to vector<32x64xf32>
    %c1_19 = arith.constant 1 : index
    %c0_20 = arith.constant 0 : index
    %c0_21 = arith.constant 0 : index
    %12 = vector.load %arg1[%c1_19, %c0_20, %c0_21] : memref<3x64x128xf32, #tpu.memory_space<vmem>>, vector<1x64x128xf32>
    %13 = vector.shape_cast %12 : vector<1x64x128xf32> to vector<64x128xf32>
    %cst_22 = arith.constant dense<0.000000e+00> : vector<32x128xf32>
    %14 = tpu.matmul %11, %13, %cst_22 {dimension_numbers = #tpu.dot_dimension_numbers<[1], [0], [0], [1], [0, 0, 1, 1], [], []>} : vector<32x64xf32>, vector<64x128xf32>, vector<32x128xf32> -> vector<32x128xf32>
    %15 = arith.addf %9, %14 : vector<32x128xf32>
    %c0_23 = arith.constant 0 : index
    %c2 = arith.constant 2 : index
    %c0_24 = arith.constant 0 : index
    %16 = vector.load %arg10[%c0_23, %c2, %c0_24] : memref<2x18x64xf32, #tpu.memory_space<vmem>>, vector<2x16x64xf32>
    %17 = vector.shape_cast %16 : vector<2x16x64xf32> to vector<32x64xf32>
    %c2_25 = arith.constant 2 : index
    %c0_26 = arith.constant 0 : index
    %c0_27 = arith.constant 0 : index
    %18 = vector.load %arg1[%c2_25, %c0_26, %c0_27] : memref<3x64x128xf32, #tpu.memory_space<vmem>>, vector<1x64x128xf32>
    %19 = vector.shape_cast %18 : vector<1x64x128xf32> to vector<64x128xf32>
    %cst_28 = arith.constant dense<0.000000e+00> : vector<32x128xf32>
    %20 = tpu.matmul %17, %19, %cst_28 {dimension_numbers = #tpu.dot_dimension_numbers<[1], [0], [0], [1], [0, 0, 1, 1], [], []>} : vector<32x64xf32>, vector<64x128xf32>, vector<32x128xf32> -> vector<32x128xf32>
    %21 = arith.addf %15, %20 : vector<32x128xf32>
    %22 = vector.shape_cast %21 : vector<32x128xf32> to vector<2x16x128xf32>
    %cst_29 = arith.constant dense<0.000000e+00> : vector<2x128xf32>
    %23 = vector.multi_reduction <add>, %22, %cst_29 [1] : vector<2x16x128xf32> to vector<2x128xf32>
    %24 = arith.mulf %22, %22 : vector<2x16x128xf32>
    %cst_30 = arith.constant dense<0.000000e+00> : vector<2x128xf32>
    %25 = vector.multi_reduction <add>, %24, %cst_30 [1] : vector<2x16x128xf32> to vector<2x128xf32>
    %c0_31 = arith.constant 0 : index
    %c0_32 = arith.constant 0 : index
    %26 = vector.load %arg7[%c0_31, %c0_32] : memref<128x8xf32, #tpu.memory_space<vmem>>, vector<128x8xf32>
    %cst_33 = arith.constant dense<0.000000e+00> : vector<2x8xf32>
    %27 = tpu.matmul %23, %26, %cst_33 {dimension_numbers = #tpu.dot_dimension_numbers<[1], [0], [0], [1], [0, 0, 1, 1], [], []>} : vector<2x128xf32>, vector<128x8xf32>, vector<2x8xf32> -> vector<2x8xf32>
    %c0_34 = arith.constant 0 : index
    %c0_35 = arith.constant 0 : index
    %28 = vector.load %arg7[%c0_34, %c0_35] : memref<128x8xf32, #tpu.memory_space<vmem>>, vector<128x8xf32>
    %cst_36 = arith.constant dense<0.000000e+00> : vector<2x8xf32>
    %29 = tpu.matmul %25, %28, %cst_36 {dimension_numbers = #tpu.dot_dimension_numbers<[1], [0], [0], [1], [0, 0, 1, 1], [], []>} : vector<2x128xf32>, vector<128x8xf32>, vector<2x8xf32> -> vector<2x8xf32>
    %cst_37 = arith.constant 3.906250e-03 : f32
    %30 = vector.broadcast %cst_37 : f32 to vector<2x8xf32>
    %31 = arith.mulf %27, %30 : vector<2x8xf32>
    %cst_38 = arith.constant 3.906250e-03 : f32
    %32 = vector.broadcast %cst_38 : f32 to vector<2x8xf32>
    %33 = arith.mulf %29, %32 : vector<2x8xf32>
    %34 = arith.mulf %31, %31 : vector<2x8xf32>
    %35 = arith.subf %33, %34 : vector<2x8xf32>
    %cst_39 = arith.constant 9.99999974E-6 : f32
    %36 = vector.broadcast %cst_39 : f32 to vector<2x8xf32>
    %37 = arith.addf %35, %36 : vector<2x8xf32>
    %38 = math.rsqrt %37 : vector<2x8xf32>
    %39 = arith.mulf %35, %38 : vector<2x8xf32>
    %40 = arith.mulf %39, %38 : vector<2x8xf32>
    %cst_40 = arith.constant dense<0.000000e+00> : vector<8xf32>
    %41 = vector.multi_reduction <add>, %40, %cst_40 [0] : vector<2x8xf32> to vector<8xf32>
    %42 = vector.shape_cast %41 : vector<8xf32> to vector<1x8xf32>
    %cst_41 = arith.constant 2.000000e+00 : f32
    %43 = vector.broadcast %cst_41 : f32 to vector<1x8xf32>
    %44 = arith.divf %42, %43 : vector<1x8xf32>
    %cst_42 = arith.constant 9.99999974E-6 : f32
    %45 = vector.broadcast %cst_42 : f32 to vector<1x8xf32>
    %46 = arith.addf %44, %45 : vector<1x8xf32>
    %47 = math.rsqrt %46 : vector<1x8xf32>
    %c0_43 = arith.constant 0 : index
    %c0_44 = arith.constant 0 : index
    %48 = vector.load %arg2[%c0_43, %c0_44] : memref<1x8xf32, #tpu.memory_space<vmem>>, vector<1x8xf32>
    %49 = arith.mulf %47, %48 : vector<1x8xf32>
    %50 = vector.broadcast %49 : vector<1x8xf32> to vector<2x8xf32>
    %51 = arith.mulf %38, %50 : vector<2x8xf32>
    %c0_45 = arith.constant 0 : index
    %c0_46 = arith.constant 0 : index
    %52 = vector.load %arg3[%c0_45, %c0_46] : memref<1x8xf32, #tpu.memory_space<vmem>>, vector<1x8xf32>
    %53 = arith.mulf %31, %51 : vector<2x8xf32>
    %54 = vector.broadcast %52 : vector<1x8xf32> to vector<2x8xf32>
    %55 = arith.subf %54, %53 : vector<2x8xf32>
    %c0_47 = arith.constant 0 : index
    %c0_48 = arith.constant 0 : index
    %56 = vector.load %arg8[%c0_47, %c0_48] : memref<8x128xf32, #tpu.memory_space<vmem>>, vector<8x128xf32>
    %cst_49 = arith.constant dense<0.000000e+00> : vector<2x128xf32>
    %57 = tpu.matmul %51, %56, %cst_49 {dimension_numbers = #tpu.dot_dimension_numbers<[1], [0], [0], [1], [0, 0, 1, 1], [], []>} : vector<2x8xf32>, vector<8x128xf32>, vector<2x128xf32> -> vector<2x128xf32>
    %c0_50 = arith.constant 0 : index
    %c0_51 = arith.constant 0 : index
    %58 = vector.load %arg8[%c0_50, %c0_51] : memref<8x128xf32, #tpu.memory_space<vmem>>, vector<8x128xf32>
    %cst_52 = arith.constant dense<0.000000e+00> : vector<2x128xf32>
    %59 = tpu.matmul %55, %58, %cst_52 {dimension_numbers = #tpu.dot_dimension_numbers<[1], [0], [0], [1], [0, 0, 1, 1], [], []>} : vector<2x8xf32>, vector<8x128xf32>, vector<2x128xf32> -> vector<2x128xf32>
    %60 = vector.shape_cast %57 : vector<2x128xf32> to vector<2x1x128xf32>
    %61 = vector.broadcast %60 : vector<2x1x128xf32> to vector<2x16x128xf32>
    %62 = arith.mulf %22, %61 : vector<2x16x128xf32>
    %63 = vector.shape_cast %59 : vector<2x128xf32> to vector<2x1x128xf32>
    %64 = vector.broadcast %63 : vector<2x1x128xf32> to vector<2x16x128xf32>
    %65 = arith.addf %62, %64 : vector<2x16x128xf32>
    %cst_53 = arith.constant 0.000000e+00 : f32
    %66 = vector.broadcast %cst_53 : f32 to vector<2x16x128xf32>
    %67 = arith.maximumf %65, %66 : vector<2x16x128xf32>
    %cst_54 = arith.constant 0.000000e+00 : f32
    %68 = vector.broadcast %cst_54 : f32 to vector<2x1x128xf32>
    %c0_55 = arith.constant 0 : index
    %c0_56 = arith.constant 0 : index
    %c0_57 = arith.constant 0 : index
    %69 = vector.load %arg11[%c0_55, %c0_56, %c0_57] : memref<2x18x128xf32, #tpu.memory_space<vmem>>, vector<2x1x128xf32>
    tpu.vector_store %arg11[%c0_55, %c0_56, %c0_57], %68 {strides = array<i32>} : memref<2x18x128xf32, #tpu.memory_space<vmem>>, vector<2x1x128xf32>,
    %c0_58 = arith.constant 0 : index
    %c17_59 = arith.constant 17 : index
    %c0_60 = arith.constant 0 : index
    %70 = vector.load %arg11[%c0_58, %c17_59, %c0_60] : memref<2x18x128xf32, #tpu.memory_space<vmem>>, vector<2x1x128xf32>
    tpu.vector_store %arg11[%c0_58, %c17_59, %c0_60], %68 {strides = array<i32>} : memref<2x18x128xf32, #tpu.memory_space<vmem>>, vector<2x1x128xf32>,
    %c0_61 = arith.constant 0 : index
    %c1_62 = arith.constant 1 : index
    %c0_63 = arith.constant 0 : index
    %71 = vector.load %arg11[%c0_61, %c1_62, %c0_63] : memref<2x18x128xf32, #tpu.memory_space<vmem>>, vector<2x16x128xf32>
    tpu.vector_store %arg11[%c0_61, %c1_62, %c0_63], %67 {strides = array<i32>} : memref<2x18x128xf32, #tpu.memory_space<vmem>>, vector<2x16x128xf32>,
    %c0_64 = arith.constant 0 : index
    %c0_65 = arith.constant 0 : index
    %c0_66 = arith.constant 0 : index
    %72 = vector.load %arg11[%c0_64, %c0_65, %c0_66] : memref<2x18x128xf32, #tpu.memory_space<vmem>>, vector<2x16x128xf32>
    %73 = vector.shape_cast %72 : vector<2x16x128xf32> to vector<32x128xf32>
    %c0_67 = arith.constant 0 : index
    %c0_68 = arith.constant 0 : index
    %c0_69 = arith.constant 0 : index
    %74 = vector.load %arg4[%c0_67, %c0_68, %c0_69] : memref<3x128x128xf32, #tpu.memory_space<vmem>>, vector<1x128x128xf32>
    %75 = vector.shape_cast %74 : vector<1x128x128xf32> to vector<128x128xf32>
    %cst_70 = arith.constant dense<0.000000e+00> : vector<32x128xf32>
    %76 = tpu.matmul %73, %75, %cst_70 {dimension_numbers = #tpu.dot_dimension_numbers<[1], [0], [0], [1], [0, 0, 1, 1], [], []>} : vector<32x128xf32>, vector<128x128xf32>, vector<32x128xf32> -> vector<32x128xf32>
    %c0_71 = arith.constant 0 : index
    %c1_72 = arith.constant 1 : index
    %c0_73 = arith.constant 0 : index
    %77 = vector.load %arg11[%c0_71, %c1_72, %c0_73] : memref<2x18x128xf32, #tpu.memory_space<vmem>>, vector<2x16x128xf32>
    %78 = vector.shape_cast %77 : vector<2x16x128xf32> to vector<32x128xf32>
    %c1_74 = arith.constant 1 : index
    %c0_75 = arith.constant 0 : index
    %c0_76 = arith.constant 0 : index
    %79 = vector.load %arg4[%c1_74, %c0_75, %c0_76] : memref<3x128x128xf32, #tpu.memory_space<vmem>>, vector<1x128x128xf32>
    %80 = vector.shape_cast %79 : vector<1x128x128xf32> to vector<128x128xf32>
    %cst_77 = arith.constant dense<0.000000e+00> : vector<32x128xf32>
    %81 = tpu.matmul %78, %80, %cst_77 {dimension_numbers = #tpu.dot_dimension_numbers<[1], [0], [0], [1], [0, 0, 1, 1], [], []>} : vector<32x128xf32>, vector<128x128xf32>, vector<32x128xf32> -> vector<32x128xf32>
    %82 = arith.addf %76, %81 : vector<32x128xf32>
    %c0_78 = arith.constant 0 : index
    %c2_79 = arith.constant 2 : index
    %c0_80 = arith.constant 0 : index
    %83 = vector.load %arg11[%c0_78, %c2_79, %c0_80] : memref<2x18x128xf32, #tpu.memory_space<vmem>>, vector<2x16x128xf32>
    %84 = vector.shape_cast %83 : vector<2x16x128xf32> to vector<32x128xf32>
    %c2_81 = arith.constant 2 : index
    %c0_82 = arith.constant 0 : index
    %c0_83 = arith.constant 0 : index
    %85 = vector.load %arg4[%c2_81, %c0_82, %c0_83] : memref<3x128x128xf32, #tpu.memory_space<vmem>>, vector<1x128x128xf32>
    %86 = vector.shape_cast %85 : vector<1x128x128xf32> to vector<128x128xf32>
    %cst_84 = arith.constant dense<0.000000e+00> : vector<32x128xf32>
    %87 = tpu.matmul %84, %86, %cst_84 {dimension_numbers = #tpu.dot_dimension_numbers<[1], [0], [0], [1], [0, 0, 1, 1], [], []>} : vector<32x128xf32>, vector<128x128xf32>, vector<32x128xf32> -> vector<32x128xf32>
    %88 = arith.addf %82, %87 : vector<32x128xf32>
    %89 = vector.shape_cast %88 : vector<32x128xf32> to vector<2x16x128xf32>
    %cst_85 = arith.constant dense<0.000000e+00> : vector<2x128xf32>
    %90 = vector.multi_reduction <add>, %89, %cst_85 [1] : vector<2x16x128xf32> to vector<2x128xf32>
    %91 = arith.mulf %89, %89 : vector<2x16x128xf32>
    %cst_86 = arith.constant dense<0.000000e+00> : vector<2x128xf32>
    %92 = vector.multi_reduction <add>, %91, %cst_86 [1] : vector<2x16x128xf32> to vector<2x128xf32>
    %c0_87 = arith.constant 0 : index
    %c0_88 = arith.constant 0 : index
    %93 = vector.load %arg7[%c0_87, %c0_88] : memref<128x8xf32, #tpu.memory_space<vmem>>, vector<128x8xf32>
    %cst_89 = arith.constant dense<0.000000e+00> : vector<2x8xf32>
    %94 = tpu.matmul %90, %93, %cst_89 {dimension_numbers = #tpu.dot_dimension_numbers<[1], [0], [0], [1], [0, 0, 1, 1], [], []>} : vector<2x128xf32>, vector<128x8xf32>, vector<2x8xf32> -> vector<2x8xf32>
    %c0_90 = arith.constant 0 : index
    %c0_91 = arith.constant 0 : index
    %95 = vector.load %arg7[%c0_90, %c0_91] : memref<128x8xf32, #tpu.memory_space<vmem>>, vector<128x8xf32>
    %cst_92 = arith.constant dense<0.000000e+00> : vector<2x8xf32>
    %96 = tpu.matmul %92, %95, %cst_92 {dimension_numbers = #tpu.dot_dimension_numbers<[1], [0], [0], [1], [0, 0, 1, 1], [], []>} : vector<2x128xf32>, vector<128x8xf32>, vector<2x8xf32> -> vector<2x8xf32>
    %cst_93 = arith.constant 3.906250e-03 : f32
    %97 = vector.broadcast %cst_93 : f32 to vector<2x8xf32>
    %98 = arith.mulf %94, %97 : vector<2x8xf32>
    %cst_94 = arith.constant 3.906250e-03 : f32
    %99 = vector.broadcast %cst_94 : f32 to vector<2x8xf32>
    %100 = arith.mulf %96, %99 : vector<2x8xf32>
    %101 = arith.mulf %98, %98 : vector<2x8xf32>
    %102 = arith.subf %100, %101 : vector<2x8xf32>
    %cst_95 = arith.constant 9.99999974E-6 : f32
    %103 = vector.broadcast %cst_95 : f32 to vector<2x8xf32>
    %104 = arith.addf %102, %103 : vector<2x8xf32>
    %105 = math.rsqrt %104 : vector<2x8xf32>
    %106 = arith.mulf %102, %105 : vector<2x8xf32>
    %107 = arith.mulf %106, %105 : vector<2x8xf32>
    %cst_96 = arith.constant dense<0.000000e+00> : vector<8xf32>
    %108 = vector.multi_reduction <add>, %107, %cst_96 [0] : vector<2x8xf32> to vector<8xf32>
    %109 = vector.shape_cast %108 : vector<8xf32> to vector<1x8xf32>
    %cst_97 = arith.constant 2.000000e+00 : f32
    %110 = vector.broadcast %cst_97 : f32 to vector<1x8xf32>
    %111 = arith.divf %109, %110 : vector<1x8xf32>
    %cst_98 = arith.constant 9.99999974E-6 : f32
    %112 = vector.broadcast %cst_98 : f32 to vector<1x8xf32>
    %113 = arith.addf %111, %112 : vector<1x8xf32>
    %114 = math.rsqrt %113 : vector<1x8xf32>
    %c0_99 = arith.constant 0 : index
    %c0_100 = arith.constant 0 : index
    %115 = vector.load %arg5[%c0_99, %c0_100] : memref<1x8xf32, #tpu.memory_space<vmem>>, vector<1x8xf32>
    %116 = arith.mulf %114, %115 : vector<1x8xf32>
    %117 = vector.broadcast %116 : vector<1x8xf32> to vector<2x8xf32>
    %118 = arith.mulf %105, %117 : vector<2x8xf32>
    %c0_101 = arith.constant 0 : index
    %c0_102 = arith.constant 0 : index
    %119 = vector.load %arg6[%c0_101, %c0_102] : memref<1x8xf32, #tpu.memory_space<vmem>>, vector<1x8xf32>
    %120 = arith.mulf %98, %118 : vector<2x8xf32>
    %121 = vector.broadcast %119 : vector<1x8xf32> to vector<2x8xf32>
    %122 = arith.subf %121, %120 : vector<2x8xf32>
    %c0_103 = arith.constant 0 : index
    %c0_104 = arith.constant 0 : index
    %123 = vector.load %arg8[%c0_103, %c0_104] : memref<8x128xf32, #tpu.memory_space<vmem>>, vector<8x128xf32>
    %cst_105 = arith.constant dense<0.000000e+00> : vector<2x128xf32>
    %124 = tpu.matmul %118, %123, %cst_105 {dimension_numbers = #tpu.dot_dimension_numbers<[1], [0], [0], [1], [0, 0, 1, 1], [], []>} : vector<2x8xf32>, vector<8x128xf32>, vector<2x128xf32> -> vector<2x128xf32>
    %c0_106 = arith.constant 0 : index
    %c0_107 = arith.constant 0 : index
    %125 = vector.load %arg8[%c0_106, %c0_107] : memref<8x128xf32, #tpu.memory_space<vmem>>, vector<8x128xf32>
    %cst_108 = arith.constant dense<0.000000e+00> : vector<2x128xf32>
    %126 = tpu.matmul %122, %125, %cst_108 {dimension_numbers = #tpu.dot_dimension_numbers<[1], [0], [0], [1], [0, 0, 1, 1], [], []>} : vector<2x8xf32>, vector<8x128xf32>, vector<2x128xf32> -> vector<2x128xf32>
    %127 = vector.shape_cast %124 : vector<2x128xf32> to vector<2x1x128xf32>
    %128 = vector.broadcast %127 : vector<2x1x128xf32> to vector<2x16x128xf32>
    %129 = arith.mulf %89, %128 : vector<2x16x128xf32>
    %130 = vector.shape_cast %126 : vector<2x128xf32> to vector<2x1x128xf32>
    %131 = vector.broadcast %130 : vector<2x1x128xf32> to vector<2x16x128xf32>
    %132 = arith.addf %129, %131 : vector<2x16x128xf32>
    %cst_109 = arith.constant 0.000000e+00 : f32
    %133 = vector.broadcast %cst_109 : f32 to vector<2x16x128xf32>
    %134 = arith.maximumf %132, %133 : vector<2x16x128xf32>
    %c0_110 = arith.constant 0 : index
    %c0_111 = arith.constant 0 : index
    %c0_112 = arith.constant 0 : index
    %135 = vector.load %arg9[%c0_110, %c0_111, %c0_112] : memref<2x16x128xf32, #tpu.memory_space<vmem>>, vector<2x16x128xf32>
    tpu.vector_store %arg9[%c0_110, %c0_111, %c0_112], %134 {strides = array<i32>} : memref<2x16x128xf32, #tpu.memory_space<vmem>>, vector<2x16x128xf32>,
    return
  }
}

</mosaic_0001>

<llo_original>
// kernel: conv_module_forward.1
$region0: #{conv_module_forward.1}
  #allocation0 [shape = 'u32[]', space=smem, size = 0x4, offset = 0x4, fixed_abs, tag = 'smem constant byte address 0x4 - core index']
  #allocation1 [shape = 'u32[144,128]{1,0:T(1,128)}', space=vmem, size = 0x12000, scoped, tag = 'internal scratch']
  #allocation2 [shape = 'f32[2,18,64]{2,1,0:T(8,128)}', space=vmem, size = 0x6000, scoped, tag = 'scratch operand']
  #allocation3 [shape = 'f32[2,18,128]{2,1,0:T(8,128)}', space=vmem, size = 0x6000, scoped, tag = 'scratch operand']
  %s0 = inlined_call_operand.vmem [shape: f32[2,16,64], index: 0, kind: input, shape index: {}]
  %s1 = inlined_call_operand.vmem [shape: f32[3,64,128], index: 1, kind: input, shape index: {}]
  %s2 = inlined_call_operand.vmem [shape: f32[1,8], index: 2, kind: input, shape index: {}]
  %s3 = inlined_call_operand.vmem [shape: f32[1,8], index: 3, kind: input, shape index: {}]
  %s4 = inlined_call_operand.vmem [shape: f32[3,128,128], index: 4, kind: input, shape index: {}]
  %s5 = inlined_call_operand.vmem [shape: f32[1,8], index: 5, kind: input, shape index: {}]
  %s6 = inlined_call_operand.vmem [shape: f32[1,8], index: 6, kind: input, shape index: {}]
  %s7 = inlined_call_operand.vmem [shape: f32[128,8], index: 7, kind: input, shape index: {}]
  %s8 = inlined_call_operand.vmem [shape: f32[8,128], index: 8, kind: input, shape index: {}]
  %s9 = inlined_call_operand.vmem [shape: f32[2,16,128], index: 9, kind: output, shape index: {}]
  %s10 = sld [smem:[#allocation0]]
  $region46: #{conv_module_forward.1} parent=0
    _
  %s12 = ssub.s32 1, %s10
  %s13 = scalar_select 0, %s12, %s10
  // Predicated region
  $region2: #{conv_module_forward.1} parent=0 // pred_check
    _
  $region3: #{conv_module_forward.1} parent=0 // pred_check_branch
    %15 = sbr.rel (0) target = $region5
  $region4: #{conv_module_forward.1} parent=0 // pred_region
    _
  $region5: #{conv_module_forward.1} parent=0 // pred_fallthru
    _
  // Predicated region
  $region6: #{conv_module_forward.1} parent=0 // pred_check
    _
  $region7: #{conv_module_forward.1} parent=0 // pred_check_branch
    %17 = sbr.rel (0) target = $region9
  $region8: #{conv_module_forward.1} parent=0 // pred_region
    _
  $region9: #{conv_module_forward.1} parent=0 // pred_fallthru
    _
  // Predicated region
  $region10: #{conv_module_forward.1} parent=0 // pred_check
    _
  $region11: #{conv_module_forward.1} parent=0 // pred_check_branch
    %19 = sbr.rel (0) target = $region13
  $region12: #{conv_module_forward.1} parent=0 // pred_region
    _
  $region13: #{conv_module_forward.1} parent=0 // pred_fallthru
    _
  // Predicated region
  $region14: #{conv_module_forward.1} parent=0 // pred_check
    _
  $region15: #{conv_module_forward.1} parent=0 // pred_check_branch
    %21 = sbr.rel (0) target = $region17
  $region16: #{conv_module_forward.1} parent=0 // pred_region
    _
  $region17: #{conv_module_forward.1} parent=0 // pred_fallthru
    _
  // Predicated region
  $region18: #{conv_module_forward.1} parent=0 // pred_check
    _
  $region19: #{conv_module_forward.1} parent=0 // pred_check_branch
    %23 = sbr.rel (0) target = $region21
  $region20: #{conv_module_forward.1} parent=0 // pred_region
    _
  $region21: #{conv_module_forward.1} parent=0 // pred_fallthru
    _
  // Predicated region
  $region22: #{conv_module_forward.1} parent=0 // pred_check
    _
  $region23: #{conv_module_forward.1} parent=0 // pred_check_branch
    %25 = sbr.rel (0) target = $region25
  $region24: #{conv_module_forward.1} parent=0 // pred_region
    _
  $region25: #{conv_module_forward.1} parent=0 // pred_fallthru
    _
  // Predicated region
  $region26: #{conv_module_forward.1} parent=0 // pred_check
    _
  $region27: #{conv_module_forward.1} parent=0 // pred_check_branch
    %27 = sbr.rel (0) target = $region29
  $region28: #{conv_module_forward.1} parent=0 // pred_region
    _
  $region29: #{conv_module_forward.1} parent=0 // pred_fallthru
    _
  // Predicated region
  $region30: #{conv_module_forward.1} parent=0 // pred_check
    _
  $region31: #{conv_module_forward.1} parent=0 // pred_check_branch
    %29 = sbr.rel (0) target = $region33
  $region32: #{conv_module_forward.1} parent=0 // pred_region
    _
  $region33: #{conv_module_forward.1} parent=0 // pred_fallthru
    _
  // Predicated region
  $region34: #{conv_module_forward.1} parent=0 // pred_check
    _
  $region35: #{conv_module_forward.1} parent=0 // pred_check_branch
    %31 = sbr.rel (0) target = $region37
  $region36: #{conv_module_forward.1} parent=0 // pred_region
    _
  $region37: #{conv_module_forward.1} parent=0 // pred_fallthru
    _
  %v32 = vld [vmem:[%s0] sm:$0xff]
  %v33 = vld [vmem:[%s0 + $0x8] sm:$0xff]
  %v34 = vld [vmem:[%s0 + $0x10] sm:$0xff]
  %v35 = vld [vmem:[%s0 + $0x18] sm:$0xff]
  %vm36 = vcmask 516096
  %37 = vst.msk [vmem:[#allocation2] sm:$0x1] %vm36, 0.0
  %38 = vst.msk [vmem:[#allocation2 + $0x18] sm:$0x1] %vm36, 0.0
  %39 = vst.msk [vmem:[#allocation2 + $0x11] sm:$0x1] %vm36, 0.0
  %40 = vst.msk [vmem:[#allocation2 + $0x29] sm:$0x1] %vm36, 0.0
  %vm41 = vcmask 523264
  %42 = vst.msk [vmem:[#allocation2 + $0x1] sm:$0xff] %vm41, %v32
  %43 = vst.msk [vmem:[#allocation2 + $0x9] sm:$0xff] %vm41, %v33
  %44 = vst.msk [vmem:[#allocation2 + $0x19] sm:$0xff] %vm41, %v34
  %45 = vst.msk [vmem:[#allocation2 + $0x21] sm:$0xff] %vm41, %v35
  %v46 = vld [vmem:[#allocation2] sm:$0xff]
  %v47 = vld [vmem:[#allocation2 + $0x8] sm:$0xff]
  %v48 = vld [vmem:[#allocation2 + $0x18] sm:$0xff]
  %v49 = vld [vmem:[#allocation2 + $0x20] sm:$0xff]
  %v50 = vld [vmem:[%s1] sm:$0xff]
  %v51 = vld [vmem:[%s1 + $0x8] sm:$0xff]
  %v52 = vld [vmem:[%s1 + $0x10] sm:$0xff]
  %v53 = vld [vmem:[%s1 + $0x18] sm:$0xff]
  %v54 = vld [vmem:[%s1 + $0x20] sm:$0xff]
  %v55 = vld [vmem:[%s1 + $0x28] sm:$0xff]
  %v56 = vld [vmem:[%s1 + $0x30] sm:$0xff]
  %v57 = vld [vmem:[%s1 + $0x38] sm:$0xff]
  %v58 = vld [vmem:[#allocation2 + $0x1] sm:$0xff]
  %v59 = vld [vmem:[#allocation2 + $0x9] sm:$0xff]
  %v60 = vld [vmem:[#allocation2 + $0x19] sm:$0xff]
  %v61 = vld [vmem:[#allocation2 + $0x21] sm:$0xff]
  %s62 = scalar_lea.vmem %s1, 64
  %v63 = vld [vmem:[%s62] sm:$0xff]
  %v64 = vld [vmem:[%s62 + $0x8] sm:$0xff]
  %v65 = vld [vmem:[%s62 + $0x10] sm:$0xff]
  %v66 = vld [vmem:[%s62 + $0x18] sm:$0xff]
  %v67 = vld [vmem:[%s62 + $0x20] sm:$0xff]
  %v68 = vld [vmem:[%s62 + $0x28] sm:$0xff]
  %v69 = vld [vmem:[%s62 + $0x30] sm:$0xff]
  %v70 = vld [vmem:[%s62 + $0x38] sm:$0xff]
  %v72 = vsel %vm41, %v58, 0
  %v75 = vsel %vm41, %v59, 0
  %v78 = vsel %vm41, %v60, 0
  %v81 = vsel %vm41, %v61, 0
  %83 = vmatprep.subr.mxu0 0.0
  %84 = vmatpush1.msra.mxu0 0.0
  %85 = vmatprep.subr.mxu0 0.0
  %86 = vmatpush1.msra.mxu0 0.0
  %87 = vmatprep.subr.mxu0 0.0
  %88 = vmatpush1.msra.mxu0 0.0
  %89 = vmatprep.subr.mxu0 0.0
  %90 = vmatpush1.msra.mxu0 0.0
  %91 = vmatprep.subr.mxu0 0.0
  %92 = vmatpush1.msra.mxu0 0.0
  %93 = vmatprep.subr.mxu0 0.0
  %94 = vmatpush1.msra.mxu0 0.0
  %95 = vmatprep.subr.mxu0 0.0
  %96 = vmatpush1.msra.mxu0 0.0
  %97 = vmatprep.subr.mxu0 0.0
  %98 = vmatpush1.msra.mxu0 0.0
  %99 = vmatprep.subr.mxu0 0.0
  %100 = vmatpush1.msra.mxu0 %v70
  %101 = vmatprep.subr.mxu0 0.0
  %102 = vmatpush1.msra.mxu0 %v69
  %103 = vmatprep.subr.mxu0 0.0
  %104 = vmatpush1.msra.mxu0 %v68
  %105 = vmatprep.subr.mxu0 0.0
  %106 = vmatpush1.msra.mxu0 %v67
  %107 = vmatprep.subr.mxu0 0.0
  %108 = vmatpush1.msra.mxu0 %v66
  %109 = vmatprep.subr.mxu0 0.0
  %110 = vmatpush1.msra.mxu0 %v65
  %111 = vmatprep.subr.mxu0 0.0
  %112 = vmatpush1.msra.mxu0 %v64
  %113 = vmatprep.subr.mxu0 0.0
  %114 = vmatpush1.msra.mxu0 %v63
  %115 = vmatprep.subr.mxu0 0.0
  %116 = vmatpush2.msra.mxu0 0.0
  %117 = vmatprep.subr.mxu0 0.0
  %118 = vmatpush2.msra.mxu0 0.0
  %119 = vmatprep.subr.mxu0 0.0
  %120 = vmatpush2.msra.mxu0 0.0
  %121 = vmatprep.subr.mxu0 0.0
  %122 = vmatpush2.msra.mxu0 0.0
  %123 = vmatprep.subr.mxu0 0.0
  %124 = vmatpush2.msra.mxu0 0.0
  %125 = vmatprep.subr.mxu0 0.0
  %126 = vmatpush2.msra.mxu0 0.0
  %127 = vmatprep.subr.mxu0 0.0
  %128 = vmatpush2.msra.mxu0 0.0
  %129 = vmatprep.subr.mxu0 0.0
  %130 = vmatpush2.msra.mxu0 0.0
  %131 = vmatprep.subr.mxu0 0.0
  %132 = vmatpush2.msra.mxu0 0.0
  %133 = vmatprep.subr.mxu0 0.0
  %134 = vmatpush2.msra.mxu0 0.0
  %135 = vmatprep.subr.mxu0 0.0
  %136 = vmatpush2.msra.mxu0 0.0
  %137 = vmatprep.subr.mxu0 0.0
  %138 = vmatpush2.msra.mxu0 0.0
  %139 = vmatprep.subr.mxu0 0.0
  %140 = vmatpush2.msra.mxu0 0.0
  %141 = vmatprep.subr.mxu0 0.0
  %142 = vmatpush2.msra.mxu0 0.0
  %143 = vmatprep.subr.mxu0 0.0
  %144 = vmatpush2.msra.mxu0 0.0
  %145 = vmatprep.subr.mxu0 0.0
  %146 = vmatpush2.msra.mxu0 0.0
  %147 = vmatprep.mubr.f32.mxu0 0.0
  %148 = vmatmul.mubr.f32.gmra.mxu0 %v72
  %v149 = vpop.f32.mrf.mxu0
  %v150 = vadd.f32 0.0, %v149
  %v151 = vpop.f32.mrf.mxu0
  %152 = vmatprep.mubr.f32.mxu0 0.0
  %153 = vmatmul.mubr.f32.gmra.mxu0 %v75
  %v154 = vpop.f32.mrf.mxu0
  %v155 = vadd.f32 0.0, %v154
  %v156 = vpop.f32.mrf.mxu0
  %157 = vmatprep.mubr.f32.mxu0 0.0
  %158 = vmatmul.mubr.f32.gmra.mxu0 %v78
  %v159 = vpop.f32.mrf.mxu0
  %v160 = vadd.f32 0.0, %v159
  %v161 = vpop.f32.mrf.mxu0
  %162 = vmatprep.mubr.f32.mxu0 0.0
  %163 = vmatmul.mubr.f32.gmra.mxu0 %v81
  %v164 = vpop.f32.mrf.mxu0
  %v165 = vadd.f32 0.0, %v164
  %v166 = vpop.f32.mrf.mxu0
  %167 = vdwg.mxu0
  %v169 = vsel %vm41, %v46, 0
  %v172 = vsel %vm41, %v47, 0
  %v175 = vsel %vm41, %v48, 0
  %v178 = vsel %vm41, %v49, 0
  %180 = vmatprep.subr.mxu0 0.0
  %181 = vmatpush1.msra.mxu0 0.0
  %182 = vmatprep.subr.mxu0 0.0
  %183 = vmatpush1.msra.mxu0 0.0
  %184 = vmatprep.subr.mxu0 0.0
  %185 = vmatpush1.msra.mxu0 0.0
  %186 = vmatprep.subr.mxu0 0.0
  %187 = vmatpush1.msra.mxu0 0.0
  %188 = vmatprep.subr.mxu0 0.0
  %189 = vmatpush1.msra.mxu0 0.0
  %190 = vmatprep.subr.mxu0 0.0
  %191 = vmatpush1.msra.mxu0 0.0
  %192 = vmatprep.subr.mxu0 0.0
  %193 = vmatpush1.msra.mxu0 0.0
  %194 = vmatprep.subr.mxu0 0.0
  %195 = vmatpush1.msra.mxu0 0.0
  %196 = vmatprep.subr.mxu0 0.0
  %197 = vmatpush1.msra.mxu0 %v57
  %198 = vmatprep.subr.mxu0 0.0
  %199 = vmatpush1.msra.mxu0 %v56
  %200 = vmatprep.subr.mxu0 0.0
  %201 = vmatpush1.msra.mxu0 %v55
  %202 = vmatprep.subr.mxu0 0.0
  %203 = vmatpush1.msra.mxu0 %v54
  %204 = vmatprep.subr.mxu0 0.0
  %205 = vmatpush1.msra.mxu0 %v53
  %206 = vmatprep.subr.mxu0 0.0
  %207 = vmatpush1.msra.mxu0 %v52
  %208 = vmatprep.subr.mxu0 0.0
  %209 = vmatpush1.msra.mxu0 %v51
  %210 = vmatprep.subr.mxu0 0.0
  %211 = vmatpush1.msra.mxu0 %v50
  %212 = vmatprep.subr.mxu0 0.0
  %213 = vmatpush2.msra.mxu0 0.0
  %214 = vmatprep.subr.mxu0 0.0
  %215 = vmatpush2.msra.mxu0 0.0
  %216 = vmatprep.subr.mxu0 0.0
  %217 = vmatpush2.msra.mxu0 0.0
  %218 = vmatprep.subr.mxu0 0.0
  %219 = vmatpush2.msra.mxu0 0.0
  %220 = vmatprep.subr.mxu0 0.0
  %221 = vmatpush2.msra.mxu0 0.0
  %222 = vmatprep.subr.mxu0 0.0
  %223 = vmatpush2.msra.mxu0 0.0
  %224 = vmatprep.subr.mxu0 0.0
  %225 = vmatpush2.msra.mxu0 0.0
  %226 = vmatprep.subr.mxu0 0.0
  %227 = vmatpush2.msra.mxu0 0.0
  %228 = vmatprep.subr.mxu0 0.0
  %229 = vmatpush2.msra.mxu0 0.0
  %230 = vmatprep.subr.mxu0 0.0
  %231 = vmatpush2.msra.mxu0 0.0
  %232 = vmatprep.subr.mxu0 0.0
  %233 = vmatpush2.msra.mxu0 0.0
  %234 = vmatprep.subr.mxu0 0.0
  %235 = vmatpush2.msra.mxu0 0.0
  %236 = vmatprep.subr.mxu0 0.0
  %237 = vmatpush2.msra.mxu0 0.0
  %238 = vmatprep.subr.mxu0 0.0
  %239 = vmatpush2.msra.mxu0 0.0
  %240 = vmatprep.subr.mxu0 0.0
  %241 = vmatpush2.msra.mxu0 0.0
  %242 = vmatprep.subr.mxu0 0.0
  %243 = vmatpush2.msra.mxu0 0.0
  %244 = vmatprep.mubr.f32.mxu0 0.0
  %245 = vmatmul.mubr.f32.gmra.mxu0 %v169
  %v246 = vpop.f32.mrf.mxu0
  %v247 = vadd.f32 %v150, %v246
  %v248 = vpop.f32.mrf.mxu0
  %249 = vmatprep.mubr.f32.mxu0 0.0
  %250 = vmatmul.mubr.f32.gmra.mxu0 %v172
  %v251 = vpop.f32.mrf.mxu0
  %v252 = vadd.f32 %v155, %v251
  %v253 = vpop.f32.mrf.mxu0
  %254 = vmatprep.mubr.f32.mxu0 0.0
  %255 = vmatmul.mubr.f32.gmra.mxu0 %v175
  %v256 = vpop.f32.mrf.mxu0
  %v257 = vadd.f32 %v160, %v256
  %v258 = vpop.f32.mrf.mxu0
  %259 = vmatprep.mubr.f32.mxu0 0.0
  %260 = vmatmul.mubr.f32.gmra.mxu0 %v178
  %v261 = vpop.f32.mrf.mxu0
  %v262 = vadd.f32 %v165, %v261
  %v263 = vpop.f32.mrf.mxu0
  %264 = vdwg.mxu0
  %v265 = vld [vmem:[#allocation2 + $0x2] sm:$0xff]
  %v266 = vld [vmem:[#allocation2 + $0xa] sm:$0xff]
  %v267 = vld [vmem:[#allocation2 + $0x1a] sm:$0xff]
  %v268 = vld [vmem:[#allocation2 + $0x22] sm:$0xff]
  %s269 = scalar_lea.vmem %s1, 128
  %v270 = vld [vmem:[%s269] sm:$0xff]
  %v271 = vld [vmem:[%s269 + $0x8] sm:$0xff]
  %v272 = vld [vmem:[%s269 + $0x10] sm:$0xff]
  %v273 = vld [vmem:[%s269 + $0x18] sm:$0xff]
  %v274 = vld [vmem:[%s269 + $0x20] sm:$0xff]
  %v275 = vld [vmem:[%s269 + $0x28] sm:$0xff]
  %v276 = vld [vmem:[%s269 + $0x30] sm:$0xff]
  %v277 = vld [vmem:[%s269 + $0x38] sm:$0xff]
  %v279 = vsel %vm41, %v265, 0
  %v282 = vsel %vm41, %v266, 0
  %v285 = vsel %vm41, %v267, 0
  %v288 = vsel %vm41, %v268, 0
  %290 = vmatprep.subr.mxu0 0.0
  %291 = vmatpush1.msra.mxu0 0.0
  %292 = vmatprep.subr.mxu0 0.0
  %293 = vmatpush1.msra.mxu0 0.0
  %294 = vmatprep.subr.mxu0 0.0
  %295 = vmatpush1.msra.mxu0 0.0
  %296 = vmatprep.subr.mxu0 0.0
  %297 = vmatpush1.msra.mxu0 0.0
  %298 = vmatprep.subr.mxu0 0.0
  %299 = vmatpush1.msra.mxu0 0.0
  %300 = vmatprep.subr.mxu0 0.0
  %301 = vmatpush1.msra.mxu0 0.0
  %302 = vmatprep.subr.mxu0 0.0
  %303 = vmatpush1.msra.mxu0 0.0
  %304 = vmatprep.subr.mxu0 0.0
  %305 = vmatpush1.msra.mxu0 0.0
  %306 = vmatprep.subr.mxu0 0.0
  %307 = vmatpush1.msra.mxu0 %v277
  %308 = vmatprep.subr.mxu0 0.0
  %309 = vmatpush1.msra.mxu0 %v276
  %310 = vmatprep.subr.mxu0 0.0
  %311 = vmatpush1.msra.mxu0 %v275
  %312 = vmatprep.subr.mxu0 0.0
  %313 = vmatpush1.msra.mxu0 %v274
  %314 = vmatprep.subr.mxu0 0.0
  %315 = vmatpush1.msra.mxu0 %v273
  %316 = vmatprep.subr.mxu0 0.0
  %317 = vmatpush1.msra.mxu0 %v272
  %318 = vmatprep.subr.mxu0 0.0
  %319 = vmatpush1.msra.mxu0 %v271
  %320 = vmatprep.subr.mxu0 0.0
  %321 = vmatpush1.msra.mxu0 %v270
  %322 = vmatprep.subr.mxu0 0.0
  %323 = vmatpush2.msra.mxu0 0.0
  %324 = vmatprep.subr.mxu0 0.0
  %325 = vmatpush2.msra.mxu0 0.0
  %326 = vmatprep.subr.mxu0 0.0
  %327 = vmatpush2.msra.mxu0 0.0
  %328 = vmatprep.subr.mxu0 0.0
  %329 = vmatpush2.msra.mxu0 0.0
  %330 = vmatprep.subr.mxu0 0.0
  %331 = vmatpush2.msra.mxu0 0.0
  %332 = vmatprep.subr.mxu0 0.0
  %333 = vmatpush2.msra.mxu0 0.0
  %334 = vmatprep.subr.mxu0 0.0
  %335 = vmatpush2.msra.mxu0 0.0
  %336 = vmatprep.subr.mxu0 0.0
  %337 = vmatpush2.msra.mxu0 0.0
  %338 = vmatprep.subr.mxu0 0.0
  %339 = vmatpush2.msra.mxu0 0.0
  %340 = vmatprep.subr.mxu0 0.0
  %341 = vmatpush2.msra.mxu0 0.0
  %342 = vmatprep.subr.mxu0 0.0
  %343 = vmatpush2.msra.mxu0 0.0
  %344 = vmatprep.subr.mxu0 0.0
  %345 = vmatpush2.msra.mxu0 0.0
  %346 = vmatprep.subr.mxu0 0.0
  %347 = vmatpush2.msra.mxu0 0.0
  %348 = vmatprep.subr.mxu0 0.0
  %349 = vmatpush2.msra.mxu0 0.0
  %350 = vmatprep.subr.mxu0 0.0
  %351 = vmatpush2.msra.mxu0 0.0
  %352 = vmatprep.subr.mxu0 0.0
  %353 = vmatpush2.msra.mxu0 0.0
  %354 = vmatprep.mubr.f32.mxu0 0.0
  %355 = vmatmul.mubr.f32.gmra.mxu0 %v279
  %v356 = vpop.f32.mrf.mxu0
  %v357 = vadd.f32 0.0, %v356
  %v358 = vpop.f32.mrf.mxu0
  %359 = vmatprep.mubr.f32.mxu0 0.0
  %360 = vmatmul.mubr.f32.gmra.mxu0 %v282
  %v361 = vpop.f32.mrf.mxu0
  %v362 = vadd.f32 0.0, %v361
  %v363 = vpop.f32.mrf.mxu0
  %364 = vmatprep.mubr.f32.mxu0 0.0
  %365 = vmatmul.mubr.f32.gmra.mxu0 %v285
  %v366 = vpop.f32.mrf.mxu0
  %v367 = vadd.f32 0.0, %v366
  %v368 = vpop.f32.mrf.mxu0
  %369 = vmatprep.mubr.f32.mxu0 0.0
  %370 = vmatmul.mubr.f32.gmra.mxu0 %v288
  %v371 = vpop.f32.mrf.mxu0
  %v372 = vadd.f32 0.0, %v371
  %v373 = vpop.f32.mrf.mxu0
  %374 = vdwg.mxu0
  %v375 = vadd.f32 %v247, %v357
  %v376 = vadd.f32 %v252, %v362
  %v377 = vadd.f32 %v257, %v367
  %v378 = vadd.f32 %v262, %v372
  %v379 = vadd.f32 %v375, %v376
  %v380 = vrot.slane %v379, 4
  %v381 = vadd.f32 %v379, %v380
  %v382 = vrot.slane %v381, 2
  %v383 = vadd.f32 %v381, %v382
  %v384 = vrot.slane %v383, 1
  %v385 = vadd.f32 %v383, %v384
  %v386 = vadd.f32 %v377, %v378
  %v387 = vrot.slane %v386, 4
  %v388 = vadd.f32 %v386, %v387
  %v389 = vrot.slane %v388, 2
  %v390 = vadd.f32 %v388, %v389
  %v391 = vrot.slane %v390, 1
  %v392 = vadd.f32 %v390, %v391
  %v393 = vmul.f32 %v375, %v375
  %v394 = vmul.f32 %v376, %v376
  %v395 = vmul.f32 %v377, %v377
  %v396 = vmul.f32 %v378, %v378
  %v397 = vadd.f32 %v393, %v394
  %v398 = vrot.slane %v397, 4
  %v399 = vadd.f32 %v397, %v398
  %v400 = vrot.slane %v399, 2
  %v401 = vadd.f32 %v399, %v400
  %v402 = vrot.slane %v401, 1
  %v403 = vadd.f32 %v401, %v402
  %v404 = vadd.f32 %v395, %v396
  %v405 = vrot.slane %v404, 4
  %v406 = vadd.f32 %v404, %v405
  %v407 = vrot.slane %v406, 2
  %v408 = vadd.f32 %v406, %v407
  %v409 = vrot.slane %v408, 1
  %v410 = vadd.f32 %v408, %v409
  %v411 = vld [vmem:[%s7] sm:$0xff]
  %v412 = vld [vmem:[%s7 + $0x8] sm:$0xff]
  %v413 = vld [vmem:[%s7 + $0x10] sm:$0xff]
  %v414 = vld [vmem:[%s7 + $0x18] sm:$0xff]
  %v415 = vld [vmem:[%s7 + $0x20] sm:$0xff]
  %v416 = vld [vmem:[%s7 + $0x28] sm:$0xff]
  %v417 = vld [vmem:[%s7 + $0x30] sm:$0xff]
  %v418 = vld [vmem:[%s7 + $0x38] sm:$0xff]
  %v419 = vld [vmem:[%s7 + $0x40] sm:$0xff]
  %v420 = vld [vmem:[%s7 + $0x48] sm:$0xff]
  %v421 = vld [vmem:[%s7 + $0x50] sm:$0xff]
  %v422 = vld [vmem:[%s7 + $0x58] sm:$0xff]
  %v423 = vld [vmem:[%s7 + $0x60] sm:$0xff]
  %v424 = vld [vmem:[%s7 + $0x68] sm:$0xff]
  %v425 = vld [vmem:[%s7 + $0x70] sm:$0xff]
  %v426 = vld [vmem:[%s7 + $0x78] sm:$0xff]
  %vm429 = vcmask 1041409
  %v430 = vsel %vm429, %v392, %v385
  %432 = vmatprep.subr.mxu0 0.0
  %433 = vmatpush1.msra.mxu0 %v426
  %434 = vmatprep.subr.mxu0 0.0
  %435 = vmatpush1.msra.mxu0 %v425
  %436 = vmatprep.subr.mxu0 0.0
  %437 = vmatpush1.msra.mxu0 %v424
  %438 = vmatprep.subr.mxu0 0.0
  %439 = vmatpush1.msra.mxu0 %v423
  %440 = vmatprep.subr.mxu0 0.0
  %441 = vmatpush1.msra.mxu0 %v422
  %442 = vmatprep.subr.mxu0 0.0
  %443 = vmatpush1.msra.mxu0 %v421
  %444 = vmatprep.subr.mxu0 0.0
  %445 = vmatpush1.msra.mxu0 %v420
  %446 = vmatprep.subr.mxu0 0.0
  %447 = vmatpush1.msra.mxu0 %v419
  %448 = vmatprep.subr.mxu0 0.0
  %449 = vmatpush1.msra.mxu0 %v418
  %450 = vmatprep.subr.mxu0 0.0
  %451 = vmatpush1.msra.mxu0 %v417
  %452 = vmatprep.subr.mxu0 0.0
  %453 = vmatpush1.msra.mxu0 %v416
  %454 = vmatprep.subr.mxu0 0.0
  %455 = vmatpush1.msra.mxu0 %v415
  %456 = vmatprep.subr.mxu0 0.0
  %457 = vmatpush1.msra.mxu0 %v414
  %458 = vmatprep.subr.mxu0 0.0
  %459 = vmatpush1.msra.mxu0 %v413
  %460 = vmatprep.subr.mxu0 0.0
  %461 = vmatpush1.msra.mxu0 %v412
  %462 = vmatprep.subr.mxu0 0.0
  %463 = vmatpush1.msra.mxu0 %v411
  %464 = vmatprep.subr.mxu0 0.0
  %465 = vmatpush2.msra.mxu0 0.0
  %466 = vmatprep.subr.mxu0 0.0
  %467 = vmatpush2.msra.mxu0 0.0
  %468 = vmatprep.subr.mxu0 0.0
  %469 = vmatpush2.msra.mxu0 0.0
  %470 = vmatprep.subr.mxu0 0.0
  %471 = vmatpush2.msra.mxu0 0.0
  %472 = vmatprep.subr.mxu0 0.0
  %473 = vmatpush2.msra.mxu0 0.0
  %474 = vmatprep.subr.mxu0 0.0
  %475 = vmatpush2.msra.mxu0 0.0
  %476 = vmatprep.subr.mxu0 0.0
  %477 = vmatpush2.msra.mxu0 0.0
  %478 = vmatprep.subr.mxu0 0.0
  %479 = vmatpush2.msra.mxu0 0.0
  %480 = vmatprep.subr.mxu0 0.0
  %481 = vmatpush2.msra.mxu0 0.0
  %482 = vmatprep.subr.mxu0 0.0
  %483 = vmatpush2.msra.mxu0 0.0
  %484 = vmatprep.subr.mxu0 0.0
  %485 = vmatpush2.msra.mxu0 0.0
  %486 = vmatprep.subr.mxu0 0.0
  %487 = vmatpush2.msra.mxu0 0.0
  %488 = vmatprep.subr.mxu0 0.0
  %489 = vmatpush2.msra.mxu0 0.0
  %490 = vmatprep.subr.mxu0 0.0
  %491 = vmatpush2.msra.mxu0 0.0
  %492 = vmatprep.subr.mxu0 0.0
  %493 = vmatpush2.msra.mxu0 0.0
  %494 = vmatprep.subr.mxu0 0.0
  %495 = vmatpush2.msra.mxu0 0.0
  %496 = vmatprep.mubr.f32.mxu0 0.0
  %497 = vmatmul.mubr.f32.gmra.mxu0 %v430
  %v498 = vpop.f32.mrf.mxu0
  %v499 = vadd.f32 0.0, %v498
  %v500 = vpop.f32.mrf.mxu0
  %501 = vdwg.mxu0
  %v504 = vsel %vm429, %v410, %v403
  %506 = vmatprep.subr.mxu0 0.0
  %507 = vmatpush1.msra.mxu0 %v426
  %508 = vmatprep.subr.mxu0 0.0
  %509 = vmatpush1.msra.mxu0 %v425
  %510 = vmatprep.subr.mxu0 0.0
  %511 = vmatpush1.msra.mxu0 %v424
  %512 = vmatprep.subr.mxu0 0.0
  %513 = vmatpush1.msra.mxu0 %v423
  %514 = vmatprep.subr.mxu0 0.0
  %515 = vmatpush1.msra.mxu0 %v422
  %516 = vmatprep.subr.mxu0 0.0
  %517 = vmatpush1.msra.mxu0 %v421
  %518 = vmatprep.subr.mxu0 0.0
  %519 = vmatpush1.msra.mxu0 %v420
  %520 = vmatprep.subr.mxu0 0.0
  %521 = vmatpush1.msra.mxu0 %v419
  %522 = vmatprep.subr.mxu0 0.0
  %523 = vmatpush1.msra.mxu0 %v418
  %524 = vmatprep.subr.mxu0 0.0
  %525 = vmatpush1.msra.mxu0 %v417
  %526 = vmatprep.subr.mxu0 0.0
  %527 = vmatpush1.msra.mxu0 %v416
  %528 = vmatprep.subr.mxu0 0.0
  %529 = vmatpush1.msra.mxu0 %v415
  %530 = vmatprep.subr.mxu0 0.0
  %531 = vmatpush1.msra.mxu0 %v414
  %532 = vmatprep.subr.mxu0 0.0
  %533 = vmatpush1.msra.mxu0 %v413
  %534 = vmatprep.subr.mxu0 0.0
  %535 = vmatpush1.msra.mxu0 %v412
  %536 = vmatprep.subr.mxu0 0.0
  %537 = vmatpush1.msra.mxu0 %v411
  %538 = vmatprep.subr.mxu0 0.0
  %539 = vmatpush2.msra.mxu0 0.0
  %540 = vmatprep.subr.mxu0 0.0
  %541 = vmatpush2.msra.mxu0 0.0
  %542 = vmatprep.subr.mxu0 0.0
  %543 = vmatpush2.msra.mxu0 0.0
  %544 = vmatprep.subr.mxu0 0.0
  %545 = vmatpush2.msra.mxu0 0.0
  %546 = vmatprep.subr.mxu0 0.0
  %547 = vmatpush2.msra.mxu0 0.0
  %548 = vmatprep.subr.mxu0 0.0
  %549 = vmatpush2.msra.mxu0 0.0
  %550 = vmatprep.subr.mxu0 0.0
  %551 = vmatpush2.msra.mxu0 0.0
  %552 = vmatprep.subr.mxu0 0.0
  %553 = vmatpush2.msra.mxu0 0.0
  %554 = vmatprep.subr.mxu0 0.0
  %555 = vmatpush2.msra.mxu0 0.0
  %556 = vmatprep.subr.mxu0 0.0
  %557 = vmatpush2.msra.mxu0 0.0
  %558 = vmatprep.subr.mxu0 0.0
  %559 = vmatpush2.msra.mxu0 0.0
  %560 = vmatprep.subr.mxu0 0.0
  %561 = vmatpush2.msra.mxu0 0.0
  %562 = vmatprep.subr.mxu0 0.0
  %563 = vmatpush2.msra.mxu0 0.0
  %564 = vmatprep.subr.mxu0 0.0
  %565 = vmatpush2.msra.mxu0 0.0
  %566 = vmatprep.subr.mxu0 0.0
  %567 = vmatpush2.msra.mxu0 0.0
  %568 = vmatprep.subr.mxu0 0.0
  %569 = vmatpush2.msra.mxu0 0.0
  %570 = vmatprep.mubr.f32.mxu0 0.0
  %571 = vmatmul.mubr.f32.gmra.mxu0 %v504
  %v572 = vpop.f32.mrf.mxu0
  %v573 = vadd.f32 0.0, %v572
  %v574 = vpop.f32.mrf.mxu0
  %575 = vdwg.mxu0
  %v576 = vmul.f32 %v499, 0.00390625
  %v577 = vmul.f32 %v573, 0.00390625
  %v578 = vmul.f32 %v576, %v576
  %v579 = vsub.f32 %v577, %v578
  %v580 = vadd.f32 %v579, 1e-05
  %v581 = vrsqrt.pop %v580
  %v582 = vmul.f32 %v579, %v581
  %v583 = vmul.f32 %v582, %v581
  %vm584 = vcmask 58368
  %v585 = vsel %vm584, %v583, 0.0
  %v586 = vrot.slane %v585, 4
  %v587 = vadd.f32 %v585, %v586
  %v588 = vrot.slane %v587, 2
  %v589 = vadd.f32 %v587, %v588
  %v590 = vrot.slane %v589, 1
  %v591 = vadd.f32 %v589, %v590
  %v592 = vrcp.pop 2.0
  %v593 = vmul.f32 %v591, %v592
  %v594 = vadd.f32 %v593, 1e-05
  %v595 = vrsqrt.pop %v594
  %v596 = vld [vmem:[%s2] sm:$0x1]
  %v597 = vmul.f32 %v595, %v596
  %v598 = vlaneseq
  %v599 = vshrl.u32 %v598, 7
  %v600 = vsub.s32 0, %v599
  %v601 = vrot.slane %v597, %v600
  %v602 = vmul.f32 %v581, %v601
  %v603 = vld [vmem:[%s3] sm:$0x1]
  %v604 = vmul.f32 %v576, %v602
  %v606 = vlaneseq
  %v607 = vshrl.u32 %v606, 7
  %v608 = vsub.s32 0, %v607
  %v609 = vrot.slane %v603, %v608
  %v611 = vsub.f32 %v609, %v604
  %v612 = vld [vmem:[%s8] sm:$0xff]
  %vm613 = vcmask 64512
  %v615 = vsel %vm613, %v602, 0
  %617 = vmatprep.subr.mxu0 0.0
  %618 = vmatpush1.msra.mxu0 0.0
  %619 = vmatprep.subr.mxu0 0.0
  %620 = vmatpush1.msra.mxu0 0.0
  %621 = vmatprep.subr.mxu0 0.0
  %622 = vmatpush1.msra.mxu0 0.0
  %623 = vmatprep.subr.mxu0 0.0
  %624 = vmatpush1.msra.mxu0 0.0
  %625 = vmatprep.subr.mxu0 0.0
  %626 = vmatpush1.msra.mxu0 0.0
  %627 = vmatprep.subr.mxu0 0.0
  %628 = vmatpush1.msra.mxu0 0.0
  %629 = vmatprep.subr.mxu0 0.0
  %630 = vmatpush1.msra.mxu0 0.0
  %631 = vmatprep.subr.mxu0 0.0
  %632 = vmatpush1.msra.mxu0 0.0
  %633 = vmatprep.subr.mxu0 0.0
  %634 = vmatpush1.msra.mxu0 0.0
  %635 = vmatprep.subr.mxu0 0.0
  %636 = vmatpush1.msra.mxu0 0.0
  %637 = vmatprep.subr.mxu0 0.0
  %638 = vmatpush1.msra.mxu0 0.0
  %639 = vmatprep.subr.mxu0 0.0
  %640 = vmatpush1.msra.mxu0 0.0
  %641 = vmatprep.subr.mxu0 0.0
  %642 = vmatpush1.msra.mxu0 0.0
  %643 = vmatprep.subr.mxu0 0.0
  %644 = vmatpush1.msra.mxu0 0.0
  %645 = vmatprep.subr.mxu0 0.0
  %646 = vmatpush1.msra.mxu0 0.0
  %647 = vmatprep.subr.mxu0 0.0
  %648 = vmatpush1.msra.mxu0 %v612
  %649 = vmatprep.subr.mxu0 0.0
  %650 = vmatpush2.msra.mxu0 0.0
  %651 = vmatprep.subr.mxu0 0.0
  %652 = vmatpush2.msra.mxu0 0.0
  %653 = vmatprep.subr.mxu0 0.0
  %654 = vmatpush2.msra.mxu0 0.0
  %655 = vmatprep.subr.mxu0 0.0
  %656 = vmatpush2.msra.mxu0 0.0
  %657 = vmatprep.subr.mxu0 0.0
  %658 = vmatpush2.msra.mxu0 0.0
  %659 = vmatprep.subr.mxu0 0.0
  %660 = vmatpush2.msra.mxu0 0.0
  %661 = vmatprep.subr.mxu0 0.0
  %662 = vmatpush2.msra.mxu0 0.0
  %663 = vmatprep.subr.mxu0 0.0
  %664 = vmatpush2.msra.mxu0 0.0
  %665 = vmatprep.subr.mxu0 0.0
  %666 = vmatpush2.msra.mxu0 0.0
  %667 = vmatprep.subr.mxu0 0.0
  %668 = vmatpush2.msra.mxu0 0.0
  %669 = vmatprep.subr.mxu0 0.0
  %670 = vmatpush2.msra.mxu0 0.0
  %671 = vmatprep.subr.mxu0 0.0
  %672 = vmatpush2.msra.mxu0 0.0
  %673 = vmatprep.subr.mxu0 0.0
  %674 = vmatpush2.msra.mxu0 0.0
  %675 = vmatprep.subr.mxu0 0.0
  %676 = vmatpush2.msra.mxu0 0.0
  %677 = vmatprep.subr.mxu0 0.0
  %678 = vmatpush2.msra.mxu0 0.0
  %679 = vmatprep.subr.mxu0 0.0
  %680 = vmatpush2.msra.mxu0 0.0
  %681 = vmatprep.mubr.f32.mxu0 0.0
  %682 = vmatmul.mubr.f32.gmra.mxu0 %v615
  %v683 = vpop.f32.mrf.mxu0
  %v684 = vadd.f32 0.0, %v683
  %v685 = vpop.f32.mrf.mxu0
  %686 = vdwg.mxu0
  %v688 = vsel %vm613, %v611, 0
  %690 = vmatprep.subr.mxu0 0.0
  %691 = vmatpush1.msra.mxu0 0.0
  %692 = vmatprep.subr.mxu0 0.0
  %693 = vmatpush1.msra.mxu0 0.0
  %694 = vmatprep.subr.mxu0 0.0
  %695 = vmatpush1.msra.mxu0 0.0
  %696 = vmatprep.subr.mxu0 0.0
  %697 = vmatpush1.msra.mxu0 0.0
  %698 = vmatprep.subr.mxu0 0.0
  %699 = vmatpush1.msra.mxu0 0.0
  %700 = vmatprep.subr.mxu0 0.0
  %701 = vmatpush1.msra.mxu0 0.0
  %702 = vmatprep.subr.mxu0 0.0
  %703 = vmatpush1.msra.mxu0 0.0
  %704 = vmatprep.subr.mxu0 0.0
  %705 = vmatpush1.msra.mxu0 0.0
  %706 = vmatprep.subr.mxu0 0.0
  %707 = vmatpush1.msra.mxu0 0.0
  %708 = vmatprep.subr.mxu0 0.0
  %709 = vmatpush1.msra.mxu0 0.0
  %710 = vmatprep.subr.mxu0 0.0
  %711 = vmatpush1.msra.mxu0 0.0
  %712 = vmatprep.subr.mxu0 0.0
  %713 = vmatpush1.msra.mxu0 0.0
  %714 = vmatprep.subr.mxu0 0.0
  %715 = vmatpush1.msra.mxu0 0.0
  %716 = vmatprep.subr.mxu0 0.0
  %717 = vmatpush1.msra.mxu0 0.0
  %718 = vmatprep.subr.mxu0 0.0
  %719 = vmatpush1.msra.mxu0 0.0
  %720 = vmatprep.subr.mxu0 0.0
  %721 = vmatpush1.msra.mxu0 %v612
  %722 = vmatprep.subr.mxu0 0.0
  %723 = vmatpush2.msra.mxu0 0.0
  %724 = vmatprep.subr.mxu0 0.0
  %725 = vmatpush2.msra.mxu0 0.0
  %726 = vmatprep.subr.mxu0 0.0
  %727 = vmatpush2.msra.mxu0 0.0
  %728 = vmatprep.subr.mxu0 0.0
  %729 = vmatpush2.msra.mxu0 0.0
  %730 = vmatprep.subr.mxu0 0.0
  %731 = vmatpush2.msra.mxu0 0.0
  %732 = vmatprep.subr.mxu0 0.0
  %733 = vmatpush2.msra.mxu0 0.0
  %734 = vmatprep.subr.mxu0 0.0
  %735 = vmatpush2.msra.mxu0 0.0
  %736 = vmatprep.subr.mxu0 0.0
  %737 = vmatpush2.msra.mxu0 0.0
  %738 = vmatprep.subr.mxu0 0.0
  %739 = vmatpush2.msra.mxu0 0.0
  %740 = vmatprep.subr.mxu0 0.0
  %741 = vmatpush2.msra.mxu0 0.0
  %742 = vmatprep.subr.mxu0 0.0
  %743 = vmatpush2.msra.mxu0 0.0
  %744 = vmatprep.subr.mxu0 0.0
  %745 = vmatpush2.msra.mxu0 0.0
  %746 = vmatprep.subr.mxu0 0.0
  %747 = vmatpush2.msra.mxu0 0.0
  %748 = vmatprep.subr.mxu0 0.0
  %749 = vmatpush2.msra.mxu0 0.0
  %750 = vmatprep.subr.mxu0 0.0
  %751 = vmatpush2.msra.mxu0 0.0
  %752 = vmatprep.subr.mxu0 0.0
  %753 = vmatpush2.msra.mxu0 0.0
  %754 = vmatprep.mubr.f32.mxu0 0.0
  %755 = vmatmul.mubr.f32.gmra.mxu0 %v688
  %v756 = vpop.f32.mrf.mxu0
  %v757 = vadd.f32 0.0, %v756
  %v758 = vpop.f32.mrf.mxu0
  %759 = vdwg.mxu0
  %v762 = vunpack.c.l.s4 1966171168
  %v763 = vunpack.c.0.s8 %v762
  %v764 = vlaneseq
  %v765 = vshrl.u32 %v764, 7
  %v766 = vsub.s32 %v763, %v765
  %v767 = vrot.slane %v684, %v766
  %v768 = vcombine.high %v767, %v767
  %v770 = vunpack.c.l.s4 1966171168
  %v771 = vunpack.c.0.s8 %v770
  %v772 = vlaneseq
  %v773 = vshrl.u32 %v772, 7
  %v774 = vsub.s32 %v771, %v773
  %v775 = vrot.slane %v767, %v774
  %v777 = vunpack.c.l.s4 1966171168
  %v778 = vunpack.c.0.s8 %v777
  %v779 = vlaneseq
  %v780 = vshrl.u32 %v779, 7
  %v781 = vsub.s32 %v778, %v780
  %v782 = vrot.slane %v768, %v781
  %v783 = vlaneseq
  %v784 = vshrl.u32 %v783, 7
  %v785 = vsub.s32 0, %v784
  %v786 = vrot.slane %v775, %v785
  %v787 = vlaneseq
  %v788 = vshrl.u32 %v787, 7
  %v789 = vsub.s32 0, %v788
  %v790 = vrot.slane %v782, %v789
  %v793 = vmul.f32 %v375, %v786
  %v794 = vmul.f32 %v376, %v786
  %v795 = vmul.f32 %v377, %v790
  %v796 = vmul.f32 %v378, %v790
  %v799 = vunpack.c.l.s4 1966171168
  %v800 = vunpack.c.0.s8 %v799
  %v801 = vlaneseq
  %v802 = vshrl.u32 %v801, 7
  %v803 = vsub.s32 %v800, %v802
  %v804 = vrot.slane %v757, %v803
  %v805 = vcombine.high %v804, %v804
  %v807 = vunpack.c.l.s4 1966171168
  %v808 = vunpack.c.0.s8 %v807
  %v809 = vlaneseq
  %v810 = vshrl.u32 %v809, 7
  %v811 = vsub.s32 %v808, %v810
  %v812 = vrot.slane %v804, %v811
  %v814 = vunpack.c.l.s4 1966171168
  %v815 = vunpack.c.0.s8 %v814
  %v816 = vlaneseq
  %v817 = vshrl.u32 %v816, 7
  %v818 = vsub.s32 %v815, %v817
  %v819 = vrot.slane %v805, %v818
  %v820 = vlaneseq
  %v821 = vshrl.u32 %v820, 7
  %v822 = vsub.s32 0, %v821
  %v823 = vrot.slane %v812, %v822
  %v824 = vlaneseq
  %v825 = vshrl.u32 %v824, 7
  %v826 = vsub.s32 0, %v825
  %v827 = vrot.slane %v819, %v826
  %v830 = vadd.f32 %v793, %v823
  %v831 = vadd.f32 %v794, %v823
  %v832 = vadd.f32 %v795, %v827
  %v833 = vadd.f32 %v796, %v827
  %v834 = vmax.f32 %v830, 0.0
  %v835 = vmax.f32 %v831, 0.0
  %v836 = vmax.f32 %v832, 0.0
  %v837 = vmax.f32 %v833, 0.0
  %838 = vst [vmem:[#allocation3] sm:$0x1] 0.0
  %839 = vst [vmem:[#allocation3 + $0x18] sm:$0x1] 0.0
  %840 = vst [vmem:[#allocation3 + $0x11] sm:$0x1] 0.0
  %841 = vst [vmem:[#allocation3 + $0x29] sm:$0x1] 0.0
  %842 = vst [vmem:[#allocation3 + $0x1] sm:$0xff] %v834
  %843 = vst [vmem:[#allocation3 + $0x9] sm:$0xff] %v835
  %844 = vst [vmem:[#allocation3 + $0x19] sm:$0xff] %v836
  %845 = vst [vmem:[#allocation3 + $0x21] sm:$0xff] %v837
  %v846 = vld [vmem:[#allocation3] sm:$0xff]
  %v847 = vld [vmem:[#allocation3 + $0x8] sm:$0xff]
  %v848 = vld [vmem:[#allocation3 + $0x18] sm:$0xff]
  %v849 = vld [vmem:[#allocation3 + $0x20] sm:$0xff]
  %v850 = vld [vmem:[%s4] sm:$0xff]
  %v851 = vld [vmem:[%s4 + $0x8] sm:$0xff]
  %v852 = vld [vmem:[%s4 + $0x10] sm:$0xff]
  %v853 = vld [vmem:[%s4 + $0x18] sm:$0xff]
  %v854 = vld [vmem:[%s4 + $0x20] sm:$0xff]
  %v855 = vld [vmem:[%s4 + $0x28] sm:$0xff]
  %v856 = vld [vmem:[%s4 + $0x30] sm:$0xff]
  %v857 = vld [vmem:[%s4 + $0x38] sm:$0xff]
  %v858 = vld [vmem:[%s4 + $0x40] sm:$0xff]
  %v859 = vld [vmem:[%s4 + $0x48] sm:$0xff]
  %v860 = vld [vmem:[%s4 + $0x50] sm:$0xff]
  %v861 = vld [vmem:[%s4 + $0x58] sm:$0xff]
  %v862 = vld [vmem:[%s4 + $0x60] sm:$0xff]
  %v863 = vld [vmem:[%s4 + $0x68] sm:$0xff]
  %v864 = vld [vmem:[%s4 + $0x70] sm:$0xff]
  %v865 = vld [vmem:[%s4 + $0x78] sm:$0xff]
  %v866 = vld [vmem:[#allocation3 + $0x1] sm:$0xff]
  %v867 = vld [vmem:[#allocation3 + $0x9] sm:$0xff]
  %v868 = vld [vmem:[#allocation3 + $0x19] sm:$0xff]
  %v869 = vld [vmem:[#allocation3 + $0x21] sm:$0xff]
  %s870 = scalar_lea.vmem %s4, 128
  %v871 = vld [vmem:[%s870] sm:$0xff]
  %v872 = vld [vmem:[%s870 + $0x8] sm:$0xff]
  %v873 = vld [vmem:[%s870 + $0x10] sm:$0xff]
  %v874 = vld [vmem:[%s870 + $0x18] sm:$0xff]
  %v875 = vld [vmem:[%s870 + $0x20] sm:$0xff]
  %v876 = vld [vmem:[%s870 + $0x28] sm:$0xff]
  %v877 = vld [vmem:[%s870 + $0x30] sm:$0xff]
  %v878 = vld [vmem:[%s870 + $0x38] sm:$0xff]
  %v879 = vld [vmem:[%s870 + $0x40] sm:$0xff]
  %v880 = vld [vmem:[%s870 + $0x48] sm:$0xff]
  %v881 = vld [vmem:[%s870 + $0x50] sm:$0xff]
  %v882 = vld [vmem:[%s870 + $0x58] sm:$0xff]
  %v883 = vld [vmem:[%s870 + $0x60] sm:$0xff]
  %v884 = vld [vmem:[%s870 + $0x68] sm:$0xff]
  %v885 = vld [vmem:[%s870 + $0x70] sm:$0xff]
  %v886 = vld [vmem:[%s870 + $0x78] sm:$0xff]
  %887 = vmatprep.subr.mxu0 0.0
  %888 = vmatpush1.msra.mxu0 %v886
  %889 = vmatprep.subr.mxu0 0.0
  %890 = vmatpush1.msra.mxu0 %v885
  %891 = vmatprep.subr.mxu0 0.0
  %892 = vmatpush1.msra.mxu0 %v884
  %893 = vmatprep.subr.mxu0 0.0
  %894 = vmatpush1.msra.mxu0 %v883
  %895 = vmatprep.subr.mxu0 0.0
  %896 = vmatpush1.msra.mxu0 %v882
  %897 = vmatprep.subr.mxu0 0.0
  %898 = vmatpush1.msra.mxu0 %v881
  %899 = vmatprep.subr.mxu0 0.0
  %900 = vmatpush1.msra.mxu0 %v880
  %901 = vmatprep.subr.mxu0 0.0
  %902 = vmatpush1.msra.mxu0 %v879
  %903 = vmatprep.subr.mxu0 0.0
  %904 = vmatpush1.msra.mxu0 %v878
  %905 = vmatprep.subr.mxu0 0.0
  %906 = vmatpush1.msra.mxu0 %v877
  %907 = vmatprep.subr.mxu0 0.0
  %908 = vmatpush1.msra.mxu0 %v876
  %909 = vmatprep.subr.mxu0 0.0
  %910 = vmatpush1.msra.mxu0 %v875
  %911 = vmatprep.subr.mxu0 0.0
  %912 = vmatpush1.msra.mxu0 %v874
  %913 = vmatprep.subr.mxu0 0.0
  %914 = vmatpush1.msra.mxu0 %v873
  %915 = vmatprep.subr.mxu0 0.0
  %916 = vmatpush1.msra.mxu0 %v872
  %917 = vmatprep.subr.mxu0 0.0
  %918 = vmatpush1.msra.mxu0 %v871
  %919 = vmatprep.subr.mxu0 0.0
  %920 = vmatpush2.msra.mxu0 0.0
  %921 = vmatprep.subr.mxu0 0.0
  %922 = vmatpush2.msra.mxu0 0.0
  %923 = vmatprep.subr.mxu0 0.0
  %924 = vmatpush2.msra.mxu0 0.0
  %925 = vmatprep.subr.mxu0 0.0
  %926 = vmatpush2.msra.mxu0 0.0
  %927 = vmatprep.subr.mxu0 0.0
  %928 = vmatpush2.msra.mxu0 0.0
  %929 = vmatprep.subr.mxu0 0.0
  %930 = vmatpush2.msra.mxu0 0.0
  %931 = vmatprep.subr.mxu0 0.0
  %932 = vmatpush2.msra.mxu0 0.0
  %933 = vmatprep.subr.mxu0 0.0
  %934 = vmatpush2.msra.mxu0 0.0
  %935 = vmatprep.subr.mxu0 0.0
  %936 = vmatpush2.msra.mxu0 0.0
  %937 = vmatprep.subr.mxu0 0.0
  %938 = vmatpush2.msra.mxu0 0.0
  %939 = vmatprep.subr.mxu0 0.0
  %940 = vmatpush2.msra.mxu0 0.0
  %941 = vmatprep.subr.mxu0 0.0
  %942 = vmatpush2.msra.mxu0 0.0
  %943 = vmatprep.subr.mxu0 0.0
  %944 = vmatpush2.msra.mxu0 0.0
  %945 = vmatprep.subr.mxu0 0.0
  %946 = vmatpush2.msra.mxu0 0.0
  %947 = vmatprep.subr.mxu0 0.0
  %948 = vmatpush2.msra.mxu0 0.0
  %949 = vmatprep.subr.mxu0 0.0
  %950 = vmatpush2.msra.mxu0 0.0
  %951 = vmatprep.mubr.f32.mxu0 0.0
  %952 = vmatmul.mubr.f32.gmra.mxu0 %v866
  %v953 = vpop.f32.mrf.mxu0
  %v954 = vadd.f32 0.0, %v953
  %v955 = vpop.f32.mrf.mxu0
  %956 = vmatprep.mubr.f32.mxu0 0.0
  %957 = vmatmul.mubr.f32.gmra.mxu0 %v867
  %v958 = vpop.f32.mrf.mxu0
  %v959 = vadd.f32 0.0, %v958
  %v960 = vpop.f32.mrf.mxu0
  %961 = vmatprep.mubr.f32.mxu0 0.0
  %962 = vmatmul.mubr.f32.gmra.mxu0 %v868
  %v963 = vpop.f32.mrf.mxu0
  %v964 = vadd.f32 0.0, %v963
  %v965 = vpop.f32.mrf.mxu0
  %966 = vmatprep.mubr.f32.mxu0 0.0
  %967 = vmatmul.mubr.f32.gmra.mxu0 %v869
  %v968 = vpop.f32.mrf.mxu0
  %v969 = vadd.f32 0.0, %v968
  %v970 = vpop.f32.mrf.mxu0
  %971 = vdwg.mxu0
  %972 = vmatprep.subr.mxu0 0.0
  %973 = vmatpush1.msra.mxu0 %v865
  %974 = vmatprep.subr.mxu0 0.0
  %975 = vmatpush1.msra.mxu0 %v864
  %976 = vmatprep.subr.mxu0 0.0
  %977 = vmatpush1.msra.mxu0 %v863
  %978 = vmatprep.subr.mxu0 0.0
  %979 = vmatpush1.msra.mxu0 %v862
  %980 = vmatprep.subr.mxu0 0.0
  %981 = vmatpush1.msra.mxu0 %v861
  %982 = vmatprep.subr.mxu0 0.0
  %983 = vmatpush1.msra.mxu0 %v860
  %984 = vmatprep.subr.mxu0 0.0
  %985 = vmatpush1.msra.mxu0 %v859
  %986 = vmatprep.subr.mxu0 0.0
  %987 = vmatpush1.msra.mxu0 %v858
  %988 = vmatprep.subr.mxu0 0.0
  %989 = vmatpush1.msra.mxu0 %v857
  %990 = vmatprep.subr.mxu0 0.0
  %991 = vmatpush1.msra.mxu0 %v856
  %992 = vmatprep.subr.mxu0 0.0
  %993 = vmatpush1.msra.mxu0 %v855
  %994 = vmatprep.subr.mxu0 0.0
  %995 = vmatpush1.msra.mxu0 %v854
  %996 = vmatprep.subr.mxu0 0.0
  %997 = vmatpush1.msra.mxu0 %v853
  %998 = vmatprep.subr.mxu0 0.0
  %999 = vmatpush1.msra.mxu0 %v852
  %1000 = vmatprep.subr.mxu0 0.0
  %1001 = vmatpush1.msra.mxu0 %v851
  %1002 = vmatprep.subr.mxu0 0.0
  %1003 = vmatpush1.msra.mxu0 %v850
  %1004 = vmatprep.subr.mxu0 0.0
  %1005 = vmatpush2.msra.mxu0 0.0
  %1006 = vmatprep.subr.mxu0 0.0
  %1007 = vmatpush2.msra.mxu0 0.0
  %1008 = vmatprep.subr.mxu0 0.0
  %1009 = vmatpush2.msra.mxu0 0.0
  %1010 = vmatprep.subr.mxu0 0.0
  %1011 = vmatpush2.msra.mxu0 0.0
  %1012 = vmatprep.subr.mxu0 0.0
  %1013 = vmatpush2.msra.mxu0 0.0
  %1014 = vmatprep.subr.mxu0 0.0
  %1015 = vmatpush2.msra.mxu0 0.0
  %1016 = vmatprep.subr.mxu0 0.0
  %1017 = vmatpush2.msra.mxu0 0.0
  %1018 = vmatprep.subr.mxu0 0.0
  %1019 = vmatpush2.msra.mxu0 0.0
  %1020 = vmatprep.subr.mxu0 0.0
  %1021 = vmatpush2.msra.mxu0 0.0
  %1022 = vmatprep.subr.mxu0 0.0
  %1023 = vmatpush2.msra.mxu0 0.0
  %1024 = vmatprep.subr.mxu0 0.0
  %1025 = vmatpush2.msra.mxu0 0.0
  %1026 = vmatprep.subr.mxu0 0.0
  %1027 = vmatpush2.msra.mxu0 0.0
  %1028 = vmatprep.subr.mxu0 0.0
  %1029 = vmatpush2.msra.mxu0 0.0
  %1030 = vmatprep.subr.mxu0 0.0
  %1031 = vmatpush2.msra.mxu0 0.0
  %1032 = vmatprep.subr.mxu0 0.0
  %1033 = vmatpush2.msra.mxu0 0.0
  %1034 = vmatprep.subr.mxu0 0.0
  %1035 = vmatpush2.msra.mxu0 0.0
  %1036 = vmatprep.mubr.f32.mxu0 0.0
  %1037 = vmatmul.mubr.f32.gmra.mxu0 %v846
  %v1038 = vpop.f32.mrf.mxu0
  %v1039 = vadd.f32 %v954, %v1038
  %v1040 = vpop.f32.mrf.mxu0
  %1041 = vmatprep.mubr.f32.mxu0 0.0
  %1042 = vmatmul.mubr.f32.gmra.mxu0 %v847
  %v1043 = vpop.f32.mrf.mxu0
  %v1044 = vadd.f32 %v959, %v1043
  %v1045 = vpop.f32.mrf.mxu0
  %1046 = vmatprep.mubr.f32.mxu0 0.0
  %1047 = vmatmul.mubr.f32.gmra.mxu0 %v848
  %v1048 = vpop.f32.mrf.mxu0
  %v1049 = vadd.f32 %v964, %v1048
  %v1050 = vpop.f32.mrf.mxu0
  %1051 = vmatprep.mubr.f32.mxu0 0.0
  %1052 = vmatmul.mubr.f32.gmra.mxu0 %v849
  %v1053 = vpop.f32.mrf.mxu0
  %v1054 = vadd.f32 %v969, %v1053
  %v1055 = vpop.f32.mrf.mxu0
  %1056 = vdwg.mxu0
  %v1057 = vld [vmem:[#allocation3 + $0x2] sm:$0xff]
  %v1058 = vld [vmem:[#allocation3 + $0xa] sm:$0xff]
  %v1059 = vld [vmem:[#allocation3 + $0x1a] sm:$0xff]
  %v1060 = vld [vmem:[#allocation3 + $0x22] sm:$0xff]
  %s1061 = scalar_lea.vmem %s4, 256
  %v1062 = vld [vmem:[%s1061] sm:$0xff]
  %v1063 = vld [vmem:[%s1061 + $0x8] sm:$0xff]
  %v1064 = vld [vmem:[%s1061 + $0x10] sm:$0xff]
  %v1065 = vld [vmem:[%s1061 + $0x18] sm:$0xff]
  %v1066 = vld [vmem:[%s1061 + $0x20] sm:$0xff]
  %v1067 = vld [vmem:[%s1061 + $0x28] sm:$0xff]
  %v1068 = vld [vmem:[%s1061 + $0x30] sm:$0xff]
  %v1069 = vld [vmem:[%s1061 + $0x38] sm:$0xff]
  %v1070 = vld [vmem:[%s1061 + $0x40] sm:$0xff]
  %v1071 = vld [vmem:[%s1061 + $0x48] sm:$0xff]
  %v1072 = vld [vmem:[%s1061 + $0x50] sm:$0xff]
  %v1073 = vld [vmem:[%s1061 + $0x58] sm:$0xff]
  %v1074 = vld [vmem:[%s1061 + $0x60] sm:$0xff]
  %v1075 = vld [vmem:[%s1061 + $0x68] sm:$0xff]
  %v1076 = vld [vmem:[%s1061 + $0x70] sm:$0xff]
  %v1077 = vld [vmem:[%s1061 + $0x78] sm:$0xff]
  %1078 = vmatprep.subr.mxu0 0.0
  %1079 = vmatpush1.msra.mxu0 %v1077
  %1080 = vmatprep.subr.mxu0 0.0
  %1081 = vmatpush1.msra.mxu0 %v1076
  %1082 = vmatprep.subr.mxu0 0.0
  %1083 = vmatpush1.msra.mxu0 %v1075
  %1084 = vmatprep.subr.mxu0 0.0
  %1085 = vmatpush1.msra.mxu0 %v1074
  %1086 = vmatprep.subr.mxu0 0.0
  %1087 = vmatpush1.msra.mxu0 %v1073
  %1088 = vmatprep.subr.mxu0 0.0
  %1089 = vmatpush1.msra.mxu0 %v1072
  %1090 = vmatprep.subr.mxu0 0.0
  %1091 = vmatpush1.msra.mxu0 %v1071
  %1092 = vmatprep.subr.mxu0 0.0
  %1093 = vmatpush1.msra.mxu0 %v1070
  %1094 = vmatprep.subr.mxu0 0.0
  %1095 = vmatpush1.msra.mxu0 %v1069
  %1096 = vmatprep.subr.mxu0 0.0
  %1097 = vmatpush1.msra.mxu0 %v1068
  %1098 = vmatprep.subr.mxu0 0.0
  %1099 = vmatpush1.msra.mxu0 %v1067
  %1100 = vmatprep.subr.mxu0 0.0
  %1101 = vmatpush1.msra.mxu0 %v1066
  %1102 = vmatprep.subr.mxu0 0.0
  %1103 = vmatpush1.msra.mxu0 %v1065
  %1104 = vmatprep.subr.mxu0 0.0
  %1105 = vmatpush1.msra.mxu0 %v1064
  %1106 = vmatprep.subr.mxu0 0.0
  %1107 = vmatpush1.msra.mxu0 %v1063
  %1108 = vmatprep.subr.mxu0 0.0
  %1109 = vmatpush1.msra.mxu0 %v1062
  %1110 = vmatprep.subr.mxu0 0.0
  %1111 = vmatpush2.msra.mxu0 0.0
  %1112 = vmatprep.subr.mxu0 0.0
  %1113 = vmatpush2.msra.mxu0 0.0
  %1114 = vmatprep.subr.mxu0 0.0
  %1115 = vmatpush2.msra.mxu0 0.0
  %1116 = vmatprep.subr.mxu0 0.0
  %1117 = vmatpush2.msra.mxu0 0.0
  %1118 = vmatprep.subr.mxu0 0.0
  %1119 = vmatpush2.msra.mxu0 0.0
  %1120 = vmatprep.subr.mxu0 0.0
  %1121 = vmatpush2.msra.mxu0 0.0
  %1122 = vmatprep.subr.mxu0 0.0
  %1123 = vmatpush2.msra.mxu0 0.0
  %1124 = vmatprep.subr.mxu0 0.0
  %1125 = vmatpush2.msra.mxu0 0.0
  %1126 = vmatprep.subr.mxu0 0.0
  %1127 = vmatpush2.msra.mxu0 0.0
  %1128 = vmatprep.subr.mxu0 0.0
  %1129 = vmatpush2.msra.mxu0 0.0
  %1130 = vmatprep.subr.mxu0 0.0
  %1131 = vmatpush2.msra.mxu0 0.0
  %1132 = vmatprep.subr.mxu0 0.0
  %1133 = vmatpush2.msra.mxu0 0.0
  %1134 = vmatprep.subr.mxu0 0.0
  %1135 = vmatpush2.msra.mxu0 0.0
  %1136 = vmatprep.subr.mxu0 0.0
  %1137 = vmatpush2.msra.mxu0 0.0
  %1138 = vmatprep.subr.mxu0 0.0
  %1139 = vmatpush2.msra.mxu0 0.0
  %1140 = vmatprep.subr.mxu0 0.0
  %1141 = vmatpush2.msra.mxu0 0.0
  %1142 = vmatprep.mubr.f32.mxu0 0.0
  %1143 = vmatmul.mubr.f32.gmra.mxu0 %v1057
  %v1144 = vpop.f32.mrf.mxu0
  %v1145 = vadd.f32 0.0, %v1144
  %v1146 = vpop.f32.mrf.mxu0
  %1147 = vmatprep.mubr.f32.mxu0 0.0
  %1148 = vmatmul.mubr.f32.gmra.mxu0 %v1058
  %v1149 = vpop.f32.mrf.mxu0
  %v1150 = vadd.f32 0.0, %v1149
  %v1151 = vpop.f32.mrf.mxu0
  %1152 = vmatprep.mubr.f32.mxu0 0.0
  %1153 = vmatmul.mubr.f32.gmra.mxu0 %v1059
  %v1154 = vpop.f32.mrf.mxu0
  %v1155 = vadd.f32 0.0, %v1154
  %v1156 = vpop.f32.mrf.mxu0
  %1157 = vmatprep.mubr.f32.mxu0 0.0
  %1158 = vmatmul.mubr.f32.gmra.mxu0 %v1060
  %v1159 = vpop.f32.mrf.mxu0
  %v1160 = vadd.f32 0.0, %v1159
  %v1161 = vpop.f32.mrf.mxu0
  %1162 = vdwg.mxu0
  %v1163 = vadd.f32 %v1039, %v1145
  %v1164 = vadd.f32 %v1044, %v1150
  %v1165 = vadd.f32 %v1049, %v1155
  %v1166 = vadd.f32 %v1054, %v1160
  %v1167 = vadd.f32 %v1163, %v1164
  %v1168 = vrot.slane %v1167, 4
  %v1169 = vadd.f32 %v1167, %v1168
  %v1170 = vrot.slane %v1169, 2
  %v1171 = vadd.f32 %v1169, %v1170
  %v1172 = vrot.slane %v1171, 1
  %v1173 = vadd.f32 %v1171, %v1172
  %v1174 = vadd.f32 %v1165, %v1166
  %v1175 = vrot.slane %v1174, 4
  %v1176 = vadd.f32 %v1174, %v1175
  %v1177 = vrot.slane %v1176, 2
  %v1178 = vadd.f32 %v1176, %v1177
  %v1179 = vrot.slane %v1178, 1
  %v1180 = vadd.f32 %v1178, %v1179
  %v1181 = vmul.f32 %v1163, %v1163
  %v1182 = vmul.f32 %v1164, %v1164
  %v1183 = vmul.f32 %v1165, %v1165
  %v1184 = vmul.f32 %v1166, %v1166
  %v1185 = vadd.f32 %v1181, %v1182
  %v1186 = vrot.slane %v1185, 4
  %v1187 = vadd.f32 %v1185, %v1186
  %v1188 = vrot.slane %v1187, 2
  %v1189 = vadd.f32 %v1187, %v1188
  %v1190 = vrot.slane %v1189, 1
  %v1191 = vadd.f32 %v1189, %v1190
  %v1192 = vadd.f32 %v1183, %v1184
  %v1193 = vrot.slane %v1192, 4
  %v1194 = vadd.f32 %v1192, %v1193
  %v1195 = vrot.slane %v1194, 2
  %v1196 = vadd.f32 %v1194, %v1195
  %v1197 = vrot.slane %v1196, 1
  %v1198 = vadd.f32 %v1196, %v1197
  %v1199 = vld [vmem:[%s7] sm:$0xff]
  %v1200 = vld [vmem:[%s7 + $0x8] sm:$0xff]
  %v1201 = vld [vmem:[%s7 + $0x10] sm:$0xff]
  %v1202 = vld [vmem:[%s7 + $0x18] sm:$0xff]
  %v1203 = vld [vmem:[%s7 + $0x20] sm:$0xff]
  %v1204 = vld [vmem:[%s7 + $0x28] sm:$0xff]
  %v1205 = vld [vmem:[%s7 + $0x30] sm:$0xff]
  %v1206 = vld [vmem:[%s7 + $0x38] sm:$0xff]
  %v1207 = vld [vmem:[%s7 + $0x40] sm:$0xff]
  %v1208 = vld [vmem:[%s7 + $0x48] sm:$0xff]
  %v1209 = vld [vmem:[%s7 + $0x50] sm:$0xff]
  %v1210 = vld [vmem:[%s7 + $0x58] sm:$0xff]
  %v1211 = vld [vmem:[%s7 + $0x60] sm:$0xff]
  %v1212 = vld [vmem:[%s7 + $0x68] sm:$0xff]
  %v1213 = vld [vmem:[%s7 + $0x70] sm:$0xff]
  %v1214 = vld [vmem:[%s7 + $0x78] sm:$0xff]
  %v1217 = vsel %vm429, %v1180, %v1173
  %1219 = vmatprep.subr.mxu0 0.0
  %1220 = vmatpush1.msra.mxu0 %v1214
  %1221 = vmatprep.subr.mxu0 0.0
  %1222 = vmatpush1.msra.mxu0 %v1213
  %1223 = vmatprep.subr.mxu0 0.0
  %1224 = vmatpush1.msra.mxu0 %v1212
  %1225 = vmatprep.subr.mxu0 0.0
  %1226 = vmatpush1.msra.mxu0 %v1211
  %1227 = vmatprep.subr.mxu0 0.0
  %1228 = vmatpush1.msra.mxu0 %v1210
  %1229 = vmatprep.subr.mxu0 0.0
  %1230 = vmatpush1.msra.mxu0 %v1209
  %1231 = vmatprep.subr.mxu0 0.0
  %1232 = vmatpush1.msra.mxu0 %v1208
  %1233 = vmatprep.subr.mxu0 0.0
  %1234 = vmatpush1.msra.mxu0 %v1207
  %1235 = vmatprep.subr.mxu0 0.0
  %1236 = vmatpush1.msra.mxu0 %v1206
  %1237 = vmatprep.subr.mxu0 0.0
  %1238 = vmatpush1.msra.mxu0 %v1205
  %1239 = vmatprep.subr.mxu0 0.0
  %1240 = vmatpush1.msra.mxu0 %v1204
  %1241 = vmatprep.subr.mxu0 0.0
  %1242 = vmatpush1.msra.mxu0 %v1203
  %1243 = vmatprep.subr.mxu0 0.0
  %1244 = vmatpush1.msra.mxu0 %v1202
  %1245 = vmatprep.subr.mxu0 0.0
  %1246 = vmatpush1.msra.mxu0 %v1201
  %1247 = vmatprep.subr.mxu0 0.0
  %1248 = vmatpush1.msra.mxu0 %v1200
  %1249 = vmatprep.subr.mxu0 0.0
  %1250 = vmatpush1.msra.mxu0 %v1199
  %1251 = vmatprep.subr.mxu0 0.0
  %1252 = vmatpush2.msra.mxu0 0.0
  %1253 = vmatprep.subr.mxu0 0.0
  %1254 = vmatpush2.msra.mxu0 0.0
  %1255 = vmatprep.subr.mxu0 0.0
  %1256 = vmatpush2.msra.mxu0 0.0
  %1257 = vmatprep.subr.mxu0 0.0
  %1258 = vmatpush2.msra.mxu0 0.0
  %1259 = vmatprep.subr.mxu0 0.0
  %1260 = vmatpush2.msra.mxu0 0.0
  %1261 = vmatprep.subr.mxu0 0.0
  %1262 = vmatpush2.msra.mxu0 0.0
  %1263 = vmatprep.subr.mxu0 0.0
  %1264 = vmatpush2.msra.mxu0 0.0
  %1265 = vmatprep.subr.mxu0 0.0
  %1266 = vmatpush2.msra.mxu0 0.0
  %1267 = vmatprep.subr.mxu0 0.0
  %1268 = vmatpush2.msra.mxu0 0.0
  %1269 = vmatprep.subr.mxu0 0.0
  %1270 = vmatpush2.msra.mxu0 0.0
  %1271 = vmatprep.subr.mxu0 0.0
  %1272 = vmatpush2.msra.mxu0 0.0
  %1273 = vmatprep.subr.mxu0 0.0
  %1274 = vmatpush2.msra.mxu0 0.0
  %1275 = vmatprep.subr.mxu0 0.0
  %1276 = vmatpush2.msra.mxu0 0.0
  %1277 = vmatprep.subr.mxu0 0.0
  %1278 = vmatpush2.msra.mxu0 0.0
  %1279 = vmatprep.subr.mxu0 0.0
  %1280 = vmatpush2.msra.mxu0 0.0
  %1281 = vmatprep.subr.mxu0 0.0
  %1282 = vmatpush2.msra.mxu0 0.0
  %1283 = vmatprep.mubr.f32.mxu0 0.0
  %1284 = vmatmul.mubr.f32.gmra.mxu0 %v1217
  %v1285 = vpop.f32.mrf.mxu0
  %v1286 = vadd.f32 0.0, %v1285
  %v1287 = vpop.f32.mrf.mxu0
  %1288 = vdwg.mxu0
  %v1291 = vsel %vm429, %v1198, %v1191
  %1293 = vmatprep.subr.mxu0 0.0
  %1294 = vmatpush1.msra.mxu0 %v1214
  %1295 = vmatprep.subr.mxu0 0.0
  %1296 = vmatpush1.msra.mxu0 %v1213
  %1297 = vmatprep.subr.mxu0 0.0
  %1298 = vmatpush1.msra.mxu0 %v1212
  %1299 = vmatprep.subr.mxu0 0.0
  %1300 = vmatpush1.msra.mxu0 %v1211
  %1301 = vmatprep.subr.mxu0 0.0
  %1302 = vmatpush1.msra.mxu0 %v1210
  %1303 = vmatprep.subr.mxu0 0.0
  %1304 = vmatpush1.msra.mxu0 %v1209
  %1305 = vmatprep.subr.mxu0 0.0
  %1306 = vmatpush1.msra.mxu0 %v1208
  %1307 = vmatprep.subr.mxu0 0.0
  %1308 = vmatpush1.msra.mxu0 %v1207
  %1309 = vmatprep.subr.mxu0 0.0
  %1310 = vmatpush1.msra.mxu0 %v1206
  %1311 = vmatprep.subr.mxu0 0.0
  %1312 = vmatpush1.msra.mxu0 %v1205
  %1313 = vmatprep.subr.mxu0 0.0
  %1314 = vmatpush1.msra.mxu0 %v1204
  %1315 = vmatprep.subr.mxu0 0.0
  %1316 = vmatpush1.msra.mxu0 %v1203
  %1317 = vmatprep.subr.mxu0 0.0
  %1318 = vmatpush1.msra.mxu0 %v1202
  %1319 = vmatprep.subr.mxu0 0.0
  %1320 = vmatpush1.msra.mxu0 %v1201
  %1321 = vmatprep.subr.mxu0 0.0
  %1322 = vmatpush1.msra.mxu0 %v1200
  %1323 = vmatprep.subr.mxu0 0.0
  %1324 = vmatpush1.msra.mxu0 %v1199
  %1325 = vmatprep.subr.mxu0 0.0
  %1326 = vmatpush2.msra.mxu0 0.0
  %1327 = vmatprep.subr.mxu0 0.0
  %1328 = vmatpush2.msra.mxu0 0.0
  %1329 = vmatprep.subr.mxu0 0.0
  %1330 = vmatpush2.msra.mxu0 0.0
  %1331 = vmatprep.subr.mxu0 0.0
  %1332 = vmatpush2.msra.mxu0 0.0
  %1333 = vmatprep.subr.mxu0 0.0
  %1334 = vmatpush2.msra.mxu0 0.0
  %1335 = vmatprep.subr.mxu0 0.0
  %1336 = vmatpush2.msra.mxu0 0.0
  %1337 = vmatprep.subr.mxu0 0.0
  %1338 = vmatpush2.msra.mxu0 0.0
  %1339 = vmatprep.subr.mxu0 0.0
  %1340 = vmatpush2.msra.mxu0 0.0
  %1341 = vmatprep.subr.mxu0 0.0
  %1342 = vmatpush2.msra.mxu0 0.0
  %1343 = vmatprep.subr.mxu0 0.0
  %1344 = vmatpush2.msra.mxu0 0.0
  %1345 = vmatprep.subr.mxu0 0.0
  %1346 = vmatpush2.msra.mxu0 0.0
  %1347 = vmatprep.subr.mxu0 0.0
  %1348 = vmatpush2.msra.mxu0 0.0
  %1349 = vmatprep.subr.mxu0 0.0
  %1350 = vmatpush2.msra.mxu0 0.0
  %1351 = vmatprep.subr.mxu0 0.0
  %1352 = vmatpush2.msra.mxu0 0.0
  %1353 = vmatprep.subr.mxu0 0.0
  %1354 = vmatpush2.msra.mxu0 0.0
  %1355 = vmatprep.subr.mxu0 0.0
  %1356 = vmatpush2.msra.mxu0 0.0
  %1357 = vmatprep.mubr.f32.mxu0 0.0
  %1358 = vmatmul.mubr.f32.gmra.mxu0 %v1291
  %v1359 = vpop.f32.mrf.mxu0
  %v1360 = vadd.f32 0.0, %v1359
  %v1361 = vpop.f32.mrf.mxu0
  %1362 = vdwg.mxu0
  %v1363 = vmul.f32 %v1286, 0.00390625
  %v1364 = vmul.f32 %v1360, 0.00390625
  %v1365 = vmul.f32 %v1363, %v1363
  %v1366 = vsub.f32 %v1364, %v1365
  %v1367 = vadd.f32 %v1366, 1e-05
  %v1368 = vrsqrt.pop %v1367
  %v1369 = vmul.f32 %v1366, %v1368
  %v1370 = vmul.f32 %v1369, %v1368
  %v1371 = vsel %vm584, %v1370, 0.0
  %v1372 = vrot.slane %v1371, 4
  %v1373 = vadd.f32 %v1371, %v1372
  %v1374 = vrot.slane %v1373, 2
  %v1375 = vadd.f32 %v1373, %v1374
  %v1376 = vrot.slane %v1375, 1
  %v1377 = vadd.f32 %v1375, %v1376
  %v1378 = vmul.f32 %v1377, %v592
  %v1379 = vadd.f32 %v1378, 1e-05
  %v1380 = vrsqrt.pop %v1379
  %v1381 = vld [vmem:[%s5] sm:$0x1]
  %v1382 = vmul.f32 %v1380, %v1381
  %v1383 = vlaneseq
  %v1384 = vshrl.u32 %v1383, 7
  %v1385 = vsub.s32 0, %v1384
  %v1386 = vrot.slane %v1382, %v1385
  %v1387 = vmul.f32 %v1368, %v1386
  %v1388 = vld [vmem:[%s6] sm:$0x1]
  %v1389 = vmul.f32 %v1363, %v1387
  %v1391 = vlaneseq
  %v1392 = vshrl.u32 %v1391, 7
  %v1393 = vsub.s32 0, %v1392
  %v1394 = vrot.slane %v1388, %v1393
  %v1396 = vsub.f32 %v1394, %v1389
  %v1397 = vld [vmem:[%s8] sm:$0xff]
  %v1399 = vsel %vm613, %v1387, 0
  %1401 = vmatprep.subr.mxu0 0.0
  %1402 = vmatpush1.msra.mxu0 0.0
  %1403 = vmatprep.subr.mxu0 0.0
  %1404 = vmatpush1.msra.mxu0 0.0
  %1405 = vmatprep.subr.mxu0 0.0
  %1406 = vmatpush1.msra.mxu0 0.0
  %1407 = vmatprep.subr.mxu0 0.0
  %1408 = vmatpush1.msra.mxu0 0.0
  %1409 = vmatprep.subr.mxu0 0.0
  %1410 = vmatpush1.msra.mxu0 0.0
  %1411 = vmatprep.subr.mxu0 0.0
  %1412 = vmatpush1.msra.mxu0 0.0
  %1413 = vmatprep.subr.mxu0 0.0
  %1414 = vmatpush1.msra.mxu0 0.0
  %1415 = vmatprep.subr.mxu0 0.0
  %1416 = vmatpush1.msra.mxu0 0.0
  %1417 = vmatprep.subr.mxu0 0.0
  %1418 = vmatpush1.msra.mxu0 0.0
  %1419 = vmatprep.subr.mxu0 0.0
  %1420 = vmatpush1.msra.mxu0 0.0
  %1421 = vmatprep.subr.mxu0 0.0
  %1422 = vmatpush1.msra.mxu0 0.0
  %1423 = vmatprep.subr.mxu0 0.0
  %1424 = vmatpush1.msra.mxu0 0.0
  %1425 = vmatprep.subr.mxu0 0.0
  %1426 = vmatpush1.msra.mxu0 0.0
  %1427 = vmatprep.subr.mxu0 0.0
  %1428 = vmatpush1.msra.mxu0 0.0
  %1429 = vmatprep.subr.mxu0 0.0
  %1430 = vmatpush1.msra.mxu0 0.0
  %1431 = vmatprep.subr.mxu0 0.0
  %1432 = vmatpush1.msra.mxu0 %v1397
  %1433 = vmatprep.subr.mxu0 0.0
  %1434 = vmatpush2.msra.mxu0 0.0
  %1435 = vmatprep.subr.mxu0 0.0
  %1436 = vmatpush2.msra.mxu0 0.0
  %1437 = vmatprep.subr.mxu0 0.0
  %1438 = vmatpush2.msra.mxu0 0.0
  %1439 = vmatprep.subr.mxu0 0.0
  %1440 = vmatpush2.msra.mxu0 0.0
  %1441 = vmatprep.subr.mxu0 0.0
  %1442 = vmatpush2.msra.mxu0 0.0
  %1443 = vmatprep.subr.mxu0 0.0
  %1444 = vmatpush2.msra.mxu0 0.0
  %1445 = vmatprep.subr.mxu0 0.0
  %1446 = vmatpush2.msra.mxu0 0.0
  %1447 = vmatprep.subr.mxu0 0.0
  %1448 = vmatpush2.msra.mxu0 0.0
  %1449 = vmatprep.subr.mxu0 0.0
  %1450 = vmatpush2.msra.mxu0 0.0
  %1451 = vmatprep.subr.mxu0 0.0
  %1452 = vmatpush2.msra.mxu0 0.0
  %1453 = vmatprep.subr.mxu0 0.0
  %1454 = vmatpush2.msra.mxu0 0.0
  %1455 = vmatprep.subr.mxu0 0.0
  %1456 = vmatpush2.msra.mxu0 0.0
  %1457 = vmatprep.subr.mxu0 0.0
  %1458 = vmatpush2.msra.mxu0 0.0
  %1459 = vmatprep.subr.mxu0 0.0
  %1460 = vmatpush2.msra.mxu0 0.0
  %1461 = vmatprep.subr.mxu0 0.0
  %1462 = vmatpush2.msra.mxu0 0.0
  %1463 = vmatprep.subr.mxu0 0.0
  %1464 = vmatpush2.msra.mxu0 0.0
  %1465 = vmatprep.mubr.f32.mxu0 0.0
  %1466 = vmatmul.mubr.f32.gmra.mxu0 %v1399
  %v1467 = vpop.f32.mrf.mxu0
  %v1468 = vadd.f32 0.0, %v1467
  %v1469 = vpop.f32.mrf.mxu0
  %1470 = vdwg.mxu0
  %v1472 = vsel %vm613, %v1396, 0
  %1474 = vmatprep.subr.mxu0 0.0
  %1475 = vmatpush1.msra.mxu0 0.0
  %1476 = vmatprep.subr.mxu0 0.0
  %1477 = vmatpush1.msra.mxu0 0.0
  %1478 = vmatprep.subr.mxu0 0.0
  %1479 = vmatpush1.msra.mxu0 0.0
  %1480 = vmatprep.subr.mxu0 0.0
  %1481 = vmatpush1.msra.mxu0 0.0
  %1482 = vmatprep.subr.mxu0 0.0
  %1483 = vmatpush1.msra.mxu0 0.0
  %1484 = vmatprep.subr.mxu0 0.0
  %1485 = vmatpush1.msra.mxu0 0.0
  %1486 = vmatprep.subr.mxu0 0.0
  %1487 = vmatpush1.msra.mxu0 0.0
  %1488 = vmatprep.subr.mxu0 0.0
  %1489 = vmatpush1.msra.mxu0 0.0
  %1490 = vmatprep.subr.mxu0 0.0
  %1491 = vmatpush1.msra.mxu0 0.0
  %1492 = vmatprep.subr.mxu0 0.0
  %1493 = vmatpush1.msra.mxu0 0.0
  %1494 = vmatprep.subr.mxu0 0.0
  %1495 = vmatpush1.msra.mxu0 0.0
  %1496 = vmatprep.subr.mxu0 0.0
  %1497 = vmatpush1.msra.mxu0 0.0
  %1498 = vmatprep.subr.mxu0 0.0
  %1499 = vmatpush1.msra.mxu0 0.0
  %1500 = vmatprep.subr.mxu0 0.0
  %1501 = vmatpush1.msra.mxu0 0.0
  %1502 = vmatprep.subr.mxu0 0.0
  %1503 = vmatpush1.msra.mxu0 0.0
  %1504 = vmatprep.subr.mxu0 0.0
  %1505 = vmatpush1.msra.mxu0 %v1397
  %1506 = vmatprep.subr.mxu0 0.0
  %1507 = vmatpush2.msra.mxu0 0.0
  %1508 = vmatprep.subr.mxu0 0.0
  %1509 = vmatpush2.msra.mxu0 0.0
  %1510 = vmatprep.subr.mxu0 0.0
  %1511 = vmatpush2.msra.mxu0 0.0
  %1512 = vmatprep.subr.mxu0 0.0
  %1513 = vmatpush2.msra.mxu0 0.0
  %1514 = vmatprep.subr.mxu0 0.0
  %1515 = vmatpush2.msra.mxu0 0.0
  %1516 = vmatprep.subr.mxu0 0.0
  %1517 = vmatpush2.msra.mxu0 0.0
  %1518 = vmatprep.subr.mxu0 0.0
  %1519 = vmatpush2.msra.mxu0 0.0
  %1520 = vmatprep.subr.mxu0 0.0
  %1521 = vmatpush2.msra.mxu0 0.0
  %1522 = vmatprep.subr.mxu0 0.0
  %1523 = vmatpush2.msra.mxu0 0.0
  %1524 = vmatprep.subr.mxu0 0.0
  %1525 = vmatpush2.msra.mxu0 0.0
  %1526 = vmatprep.subr.mxu0 0.0
  %1527 = vmatpush2.msra.mxu0 0.0
  %1528 = vmatprep.subr.mxu0 0.0
  %1529 = vmatpush2.msra.mxu0 0.0
  %1530 = vmatprep.subr.mxu0 0.0
  %1531 = vmatpush2.msra.mxu0 0.0
  %1532 = vmatprep.subr.mxu0 0.0
  %1533 = vmatpush2.msra.mxu0 0.0
  %1534 = vmatprep.subr.mxu0 0.0
  %1535 = vmatpush2.msra.mxu0 0.0
  %1536 = vmatprep.subr.mxu0 0.0
  %1537 = vmatpush2.msra.mxu0 0.0
  %1538 = vmatprep.mubr.f32.mxu0 0.0
  %1539 = vmatmul.mubr.f32.gmra.mxu0 %v1472
  %v1540 = vpop.f32.mrf.mxu0
  %v1541 = vadd.f32 0.0, %v1540
  %v1542 = vpop.f32.mrf.mxu0
  %1543 = vdwg.mxu0
  %v1546 = vunpack.c.l.s4 1966171168
  %v1547 = vunpack.c.0.s8 %v1546
  %v1548 = vlaneseq
  %v1549 = vshrl.u32 %v1548, 7
  %v1550 = vsub.s32 %v1547, %v1549
  %v1551 = vrot.slane %v1468, %v1550
  %v1552 = vcombine.high %v1551, %v1551
  %v1554 = vunpack.c.l.s4 1966171168
  %v1555 = vunpack.c.0.s8 %v1554
  %v1556 = vlaneseq
  %v1557 = vshrl.u32 %v1556, 7
  %v1558 = vsub.s32 %v1555, %v1557
  %v1559 = vrot.slane %v1551, %v1558
  %v1561 = vunpack.c.l.s4 1966171168
  %v1562 = vunpack.c.0.s8 %v1561
  %v1563 = vlaneseq
  %v1564 = vshrl.u32 %v1563, 7
  %v1565 = vsub.s32 %v1562, %v1564
  %v1566 = vrot.slane %v1552, %v1565
  %v1567 = vlaneseq
  %v1568 = vshrl.u32 %v1567, 7
  %v1569 = vsub.s32 0, %v1568
  %v1570 = vrot.slane %v1559, %v1569
  %v1571 = vlaneseq
  %v1572 = vshrl.u32 %v1571, 7
  %v1573 = vsub.s32 0, %v1572
  %v1574 = vrot.slane %v1566, %v1573
  %v1577 = vmul.f32 %v1163, %v1570
  %v1578 = vmul.f32 %v1164, %v1570
  %v1579 = vmul.f32 %v1165, %v1574
  %v1580 = vmul.f32 %v1166, %v1574
  %v1583 = vunpack.c.l.s4 1966171168
  %v1584 = vunpack.c.0.s8 %v1583
  %v1585 = vlaneseq
  %v1586 = vshrl.u32 %v1585, 7
  %v1587 = vsub.s32 %v1584, %v1586
  %v1588 = vrot.slane %v1541, %v1587
  %v1589 = vcombine.high %v1588, %v1588
  %v1591 = vunpack.c.l.s4 1966171168
  %v1592 = vunpack.c.0.s8 %v1591
  %v1593 = vlaneseq
  %v1594 = vshrl.u32 %v1593, 7
  %v1595 = vsub.s32 %v1592, %v1594
  %v1596 = vrot.slane %v1588, %v1595
  %v1598 = vunpack.c.l.s4 1966171168
  %v1599 = vunpack.c.0.s8 %v1598
  %v1600 = vlaneseq
  %v1601 = vshrl.u32 %v1600, 7
  %v1602 = vsub.s32 %v1599, %v1601
  %v1603 = vrot.slane %v1589, %v1602
  %v1604 = vlaneseq
  %v1605 = vshrl.u32 %v1604, 7
  %v1606 = vsub.s32 0, %v1605
  %v1607 = vrot.slane %v1596, %v1606
  %v1608 = vlaneseq
  %v1609 = vshrl.u32 %v1608, 7
  %v1610 = vsub.s32 0, %v1609
  %v1611 = vrot.slane %v1603, %v1610
  %v1614 = vadd.f32 %v1577, %v1607
  %v1615 = vadd.f32 %v1578, %v1607
  %v1616 = vadd.f32 %v1579, %v1611
  %v1617 = vadd.f32 %v1580, %v1611
  %v1618 = vmax.f32 %v1614, 0.0
  %v1619 = vmax.f32 %v1615, 0.0
  %v1620 = vmax.f32 %v1616, 0.0
  %v1621 = vmax.f32 %v1617, 0.0
  %1622 = vst [vmem:[%s9] sm:$0xff] %v1618
  %1623 = vst [vmem:[%s9 + $0x8] sm:$0xff] %v1619
  %1624 = vst [vmem:[%s9 + $0x10] sm:$0xff] %v1620
  %1625 = vst [vmem:[%s9 + $0x18] sm:$0xff] %v1621
  // Predicated region
  $region38: #{conv_module_forward.1} parent=0 // pred_check
    _
  $region39: #{conv_module_forward.1} parent=0 // pred_check_branch
    %1627 = sbr.rel (0) target = $region41
  $region40: #{conv_module_forward.1} parent=0 // pred_region
    _
  $region41: #{conv_module_forward.1} parent=0 // pred_fallthru
    _
  // Predicated region
  $region42: #{conv_module_forward.1} parent=0 // pred_check
    _
  $region43: #{conv_module_forward.1} parent=0 // pred_check_branch
    %1629 = sbr.rel (0) target = $region45
  $region44: #{conv_module_forward.1} parent=0 // pred_region
    _
  $region45: #{conv_module_forward.1} parent=0 // pred_fallthru
    _

</llo_original>
